<compile_context>
chip_gen: v5e
topology: v5e:2x2
jax: 0.10.0
libtpu: 0.0.40
codegen_flags: <defaults>
</compile_context>

<pallas_src>
import functools

import jax
import jax.numpy as jnp
from jax.experimental import pallas as pl
from jax.experimental.pallas import tpu as pltpu

_LANE = 128


def _round_up(v, m):
    return (v + m - 1) // m * m


def _mlp_kernel(x_ref, w1_ref, b1_ref, w2_ref, b2_ref, w3_ref, b3_ref,
                w4_ref, b4_ref, o_ref):
    """Fused forward: Linear->ReLU->Linear->ReLU->Linear->ReLU->Linear."""

    def linear(h, w_ref, b_ref):
        # bf16 into the MXU, f32 accumulate; bias add stays f32 on the VPU.
        return jnp.dot(h.astype(jnp.bfloat16), w_ref[...],
                       preferred_element_type=jnp.float32) + b_ref[...]

    h = linear(x_ref[...], w1_ref, b1_ref)                       # layer1.0
    h = jnp.maximum(h, 0.0)                                      # layer1.1
    h = linear(h, w2_ref, b2_ref)                                # layer1.2
    h = jnp.maximum(h, 0.0)                                      # layer1.3
    h = linear(h, w3_ref, b3_ref)                                # layer2.0
    h = jnp.maximum(h, 0.0)                                      # layer2.1
    o_ref[...] = linear(h, w4_ref, b4_ref).astype(o_ref.dtype)   # layer2.2


def prepare_params(params):
    """One-time prep (call at init, NOT per forward).

    Pads hidden/output feature dims to 128-lane multiples (lane-dense vregs,
    unmasked stores) and casts weights to bf16.  The input K dim (784) is left
    unpadded.  Zero padding is exact: padded lanes stay 0 through bias-add and
    ReLU and are sliced off at the end.
    """
    w1, b1, w2, b2, w3, b3, w4, b4 = params
    hid = w1.shape[1]
    out = w4.shape[1]
    hid_p = _round_up(hid, _LANE)
    out_p = _round_up(out, _LANE)

    def pad2(a, r, c):
        return jnp.pad(a, ((0, r - a.shape[0]), (0, c - a.shape[1])))

    padded = (
        pad2(w1, w1.shape[0], hid_p).astype(jnp.bfloat16),   # (784, hid_p): K unpadded
        pad2(b1, 1, hid_p).astype(jnp.float32),
        pad2(w2, hid_p, hid_p).astype(jnp.bfloat16),
        pad2(b2, 1, hid_p).astype(jnp.float32),
        pad2(w3, hid_p, hid_p).astype(jnp.bfloat16),
        pad2(b3, 1, hid_p).astype(jnp.float32),
        pad2(w4, hid_p, out_p).astype(jnp.bfloat16),
        pad2(b4, 1, out_p).astype(jnp.float32),
    )
    return padded, out


def _pick_block_batch(n):
    """grid=(1,) on single-TC chips (v5e/v6e); grid multiple of 2 on v7x."""
    n8 = _round_up(max(n, 1), 8)
    try:
        kind = jax.devices()[0].device_kind.lower()
    except Exception:  # pragma: no cover - CPU/interp fallback
        kind = ""
    if "v7" in kind and n8 >= 256:
        # 2+ grid steps so both v7x TensorCores get work; grow the block (not
        # the grid) first as batch grows.
        return 128 if n8 <= 512 else 256
    # Single TensorCore: the grid is a serial loop -> one big block.
    return min(n8, 256)


@functools.partial(jax.jit, static_argnames=("output_dim", "block_batch"))
def _forward_impl(x, padded_params, *, output_dim, block_batch):
    w1p, b1p, w2p, b2p, w3p, b3p, w4p, b4p = padded_params
    n, in_dim = x.shape
    hid_p = w1p.shape[1]
    out_p = w4p.shape[1]

    n_p = _round_up(n, block_batch)
    xp = x if n_p == n else jnp.pad(x, ((0, n_p - n), (0, 0)))
    grid = (n_p // block_batch,)

    # Weights / biases: constant index_map -> DMA'd once; single-buffered since
    # a second pipeline buffer for a never-changing block is dead VMEM.
    def resident(shape):
        return pl.BlockSpec(shape, lambda i: (0,) * len(shape),
                            pipeline_mode=pl.Buffered(1))

    w_bytes = (w1p.size + w2p.size + w3p.size + w4p.size) * 2
    b_bytes = (b1p.size + b2p.size + b3p.size + b4p.size) * 4
    flops = 2 * n_p * (in_dim * hid_p + 2 * hid_p * hid_p + hid_p * out_p)
    bytes_accessed = xp.size * 4 + n_p * out_p * 4 + w_bytes + b_bytes

    # Tight VMEM budget: double-buffered x/out blocks, single-buffered weights,
    # plus live activation tiles; 2x margin, capped at 48 MiB so the config
    # keeps headroom inside v7x's 64 MiB physical VMEM as hidden_dim scales.
    need = (2 * block_batch * in_dim * 4            # x blocks (f32)
            + 2 * block_batch * out_p * 4           # out blocks (f32)
            + w_bytes + b_bytes                     # resident weights/biases
            + block_batch * (in_dim + 3 * hid_p) * 4)   # live activations
    vmem_limit = int(min(48 * 1024 * 1024, max(4 * 1024 * 1024, 2 * need)))

    out = pl.pallas_call(
        _mlp_kernel,
        out_shape=jax.ShapeDtypeStruct((n_p, out_p), jnp.float32),
        grid_spec=pltpu.PrefetchScalarGridSpec(
            num_scalar_prefetch=0,
            grid=grid,
            in_specs=[
                pl.BlockSpec((block_batch, in_dim), lambda i: (i, 0)),  # x
                resident((in_dim, hid_p)),   # w1
                resident((1, hid_p)),        # b1
                resident((hid_p, hid_p)),    # w2
                resident((1, hid_p)),        # b2
                resident((hid_p, hid_p)),    # w3
                resident((1, hid_p)),        # b3
                resident((hid_p, out_p)),    # w4
                resident((1, out_p)),        # b4
            ],
            out_specs=pl.BlockSpec((block_batch, out_p), lambda i: (i, 0)),
        ),
        compiler_params=pltpu.CompilerParams(
            dimension_semantics=("parallel",),
            vmem_limit_bytes=vmem_limit),
        cost_estimate=pl.CostEstimate(
            flops=flops, transcendentals=0, bytes_accessed=bytes_accessed),
    )(xp, w1p, b1p, w2p, b2p, w3p, b3p, w4p, b4p)

    return out[:n, :output_dim]


def model_parallel_net_forward(x, padded_params, output_dim, *, block_batch=None):
    """Fused MLP forward.  `padded_params` comes from prepare_params()."""
    if block_batch is None:
        block_batch = _pick_block_batch(x.shape[0])
    return _forward_impl(x, padded_params, output_dim=output_dim,
                         block_batch=block_batch)


def init_params(key, input_dim, hidden_dim, output_dim):
    """Deterministic parameter init (shapes match the PyTorch module)."""
    ks = jax.random.split(key, 8)
    scale = lambda fan_in: 1.0 / jnp.sqrt(jnp.float32(fan_in))
    w1 = jax.random.uniform(ks[0], (input_dim, hidden_dim), jnp.float32,
                            -scale(input_dim), scale(input_dim))
    b1 = jax.random.uniform(ks[1], (1, hidden_dim), jnp.float32,
                            -scale(input_dim), scale(input_dim))
    w2 = jax.random.uniform(ks[2], (hidden_dim, hidden_dim), jnp.float32,
                            -scale(hidden_dim), scale(hidden_dim))
    b2 = jax.random.uniform(ks[3], (1, hidden_dim), jnp.float32,
                            -scale(hidden_dim), scale(hidden_dim))
    w3 = jax.random.uniform(ks[4], (hidden_dim, hidden_dim), jnp.float32,
                            -scale(hidden_dim), scale(hidden_dim))
    b3 = jax.random.uniform(ks[5], (1, hidden_dim), jnp.float32,
                            -scale(hidden_dim), scale(hidden_dim))
    w4 = jax.random.uniform(ks[6], (hidden_dim, output_dim), jnp.float32,
                            -scale(hidden_dim), scale(hidden_dim))
    b4 = jax.random.uniform(ks[7], (1, output_dim), jnp.float32,
                            -scale(hidden_dim), scale(hidden_dim))
    return (w1, b1, w2, b2, w3, b3, w4, b4)


def reference_forward(x, params):
    """Pure-JAX reference using the same bf16-in / f32-accumulate policy."""
    # TODO(synk): if strict f32 PyTorch parity is required, keep activations f32
    # end-to-end and widen the weight matmuls; current policy matches the kernel.
    w1, b1, w2, b2, w3, b3, w4, b4 = params

    def lin(h, w, b):
        return jnp.dot(h.astype(jnp.bfloat16), w.astype(jnp.bfloat16),
                       preferred_element_type=jnp.float32) + b

    h = jnp.maximum(lin(x, w1, b1), 0.0)
    h = jnp.maximum(lin(h, w2, b2), 0.0)
    h = jnp.maximum(lin(h, w3, b3), 0.0)
    return lin(h, w4, b4)


if __name__ == "__main__":
    # Shapes consistent with the module (x ~ (N, 784)); hidden=32, output=10.
    batch, input_dim, hidden_dim, output_dim = 256, 784, 32, 10

    key = jax.random.PRNGKey(0)
    kx, kp = jax.random.split(key)
    x = jax.random.normal(kx, (batch, input_dim), jnp.float32)
    params = init_params(kp, input_dim, hidden_dim, output_dim)

    # One-time pad/cast of the weights (kept out of the per-call forward path).
    padded_params, out_dim = prepare_params(params)
    padded_params = jax.block_until_ready(padded_params)

    out = model_parallel_net_forward(x, padded_params, out_dim)
    out = jax.block_until_ready(out)

    ref = reference_forward(x, params)
    assert out.shape == (batch, output_dim)
    assert jnp.allclose(out, ref, atol=2e-3, rtol=2e-3), "mismatch vs reference"

    print("KERNEL_OK")
</pallas_src>

<mosaic_0001>
module attributes {stable_mosaic.version = 11 : i64} {
  func.func @_mlp_kernel(%arg0: i32, %arg1: memref<256x784xf32, #tpu.memory_space<vmem>>, %arg2: memref<784x128xbf16, #tpu.memory_space<vmem>>, %arg3: memref<1x128xf32, #tpu.memory_space<vmem>>, %arg4: memref<128x128xbf16, #tpu.memory_space<vmem>>, %arg5: memref<1x128xf32, #tpu.memory_space<vmem>>, %arg6: memref<128x128xbf16, #tpu.memory_space<vmem>>, %arg7: memref<1x128xf32, #tpu.memory_space<vmem>>, %arg8: memref<128x128xbf16, #tpu.memory_space<vmem>>, %arg9: memref<1x128xf32, #tpu.memory_space<vmem>>, %arg10: memref<256x128xf32, #tpu.memory_space<vmem>>) attributes {dimension_semantics = [#tpu.dimension_semantics<parallel>], iteration_bounds = array<i64: 1>, scalar_prefetch = 0 : i64, scratch_operands = 0 : i64, tpu.core_type = #tpu.core_type<tc>, window_params = [{transform_indices = @transform_0, window_bounds = array<i64: 256, 784>}, {pipeline_mode = #tpu.pipeline_mode<synchronous>, transform_indices = @transform_1, window_bounds = array<i64: 784, 128>}, {pipeline_mode = #tpu.pipeline_mode<synchronous>, transform_indices = @transform_2, window_bounds = array<i64: 1, 128>}, {pipeline_mode = #tpu.pipeline_mode<synchronous>, transform_indices = @transform_3, window_bounds = array<i64: 128, 128>}, {pipeline_mode = #tpu.pipeline_mode<synchronous>, transform_indices = @transform_4, window_bounds = array<i64: 1, 128>}, {pipeline_mode = #tpu.pipeline_mode<synchronous>, transform_indices = @transform_5, window_bounds = array<i64: 128, 128>}, {pipeline_mode = #tpu.pipeline_mode<synchronous>, transform_indices = @transform_6, window_bounds = array<i64: 1, 128>}, {pipeline_mode = #tpu.pipeline_mode<synchronous>, transform_indices = @transform_7, window_bounds = array<i64: 128, 128>}, {pipeline_mode = #tpu.pipeline_mode<synchronous>, transform_indices = @transform_8, window_bounds = array<i64: 1, 128>}, {transform_indices = @transform_9, window_bounds = array<i64: 256, 128>}]} {
    %c0 = arith.constant 0 : index
    %c0_0 = arith.constant 0 : index
    %0 = vector.load %arg1[%c0, %c0_0] : memref<256x784xf32, #tpu.memory_space<vmem>>, vector<256x784xf32>
    %1 = arith.truncf %0 : vector<256x784xf32> to vector<256x784xbf16>
    %c0_1 = arith.constant 0 : index
    %c0_2 = arith.constant 0 : index
    %2 = vector.load %arg2[%c0_1, %c0_2] : memref<784x128xbf16, #tpu.memory_space<vmem>>, vector<784x128xbf16>
    %cst = arith.constant dense<0.000000e+00> : vector<256x128xf32>
    %3 = tpu.matmul %1, %2, %cst {dimension_numbers = #tpu.dot_dimension_numbers<[1], [0], [0], [1], [0, 0, 1, 1], [], []>} : vector<256x784xbf16>, vector<784x128xbf16>, vector<256x128xf32> -> vector<256x128xf32>
    %c0_3 = arith.constant 0 : index
    %c0_4 = arith.constant 0 : index
    %4 = vector.load %arg3[%c0_3, %c0_4] : memref<1x128xf32, #tpu.memory_space<vmem>>, vector<1x128xf32>
    %5 = vector.broadcast %4 : vector<1x128xf32> to vector<256x128xf32>
    %6 = arith.addf %3, %5 : vector<256x128xf32>
    %cst_5 = arith.constant 0.000000e+00 : f32
    %7 = vector.broadcast %cst_5 : f32 to vector<256x128xf32>
    %8 = arith.maximumf %6, %7 : vector<256x128xf32>
    %9 = arith.truncf %8 : vector<256x128xf32> to vector<256x128xbf16>
    %c0_6 = arith.constant 0 : index
    %c0_7 = arith.constant 0 : index
    %10 = vector.load %arg4[%c0_6, %c0_7] : memref<128x128xbf16, #tpu.memory_space<vmem>>, vector<128x128xbf16>
    %cst_8 = arith.constant dense<0.000000e+00> : vector<256x128xf32>
    %11 = tpu.matmul %9, %10, %cst_8 {dimension_numbers = #tpu.dot_dimension_numbers<[1], [0], [0], [1], [0, 0, 1, 1], [], []>} : vector<256x128xbf16>, vector<128x128xbf16>, vector<256x128xf32> -> vector<256x128xf32>
    %c0_9 = arith.constant 0 : index
    %c0_10 = arith.constant 0 : index
    %12 = vector.load %arg5[%c0_9, %c0_10] : memref<1x128xf32, #tpu.memory_space<vmem>>, vector<1x128xf32>
    %13 = vector.broadcast %12 : vector<1x128xf32> to vector<256x128xf32>
    %14 = arith.addf %11, %13 : vector<256x128xf32>
    %cst_11 = arith.constant 0.000000e+00 : f32
    %15 = vector.broadcast %cst_11 : f32 to vector<256x128xf32>
    %16 = arith.maximumf %14, %15 : vector<256x128xf32>
    %17 = arith.truncf %16 : vector<256x128xf32> to vector<256x128xbf16>
    %c0_12 = arith.constant 0 : index
    %c0_13 = arith.constant 0 : index
    %18 = vector.load %arg6[%c0_12, %c0_13] : memref<128x128xbf16, #tpu.memory_space<vmem>>, vector<128x128xbf16>
    %cst_14 = arith.constant dense<0.000000e+00> : vector<256x128xf32>
    %19 = tpu.matmul %17, %18, %cst_14 {dimension_numbers = #tpu.dot_dimension_numbers<[1], [0], [0], [1], [0, 0, 1, 1], [], []>} : vector<256x128xbf16>, vector<128x128xbf16>, vector<256x128xf32> -> vector<256x128xf32>
    %c0_15 = arith.constant 0 : index
    %c0_16 = arith.constant 0 : index
    %20 = vector.load %arg7[%c0_15, %c0_16] : memref<1x128xf32, #tpu.memory_space<vmem>>, vector<1x128xf32>
    %21 = vector.broadcast %20 : vector<1x128xf32> to vector<256x128xf32>
    %22 = arith.addf %19, %21 : vector<256x128xf32>
    %cst_17 = arith.constant 0.000000e+00 : f32
    %23 = vector.broadcast %cst_17 : f32 to vector<256x128xf32>
    %24 = arith.maximumf %22, %23 : vector<256x128xf32>
    %25 = arith.truncf %24 : vector<256x128xf32> to vector<256x128xbf16>
    %c0_18 = arith.constant 0 : index
    %c0_19 = arith.constant 0 : index
    %26 = vector.load %arg8[%c0_18, %c0_19] : memref<128x128xbf16, #tpu.memory_space<vmem>>, vector<128x128xbf16>
    %cst_20 = arith.constant dense<0.000000e+00> : vector<256x128xf32>
    %27 = tpu.matmul %25, %26, %cst_20 {dimension_numbers = #tpu.dot_dimension_numbers<[1], [0], [0], [1], [0, 0, 1, 1], [], []>} : vector<256x128xbf16>, vector<128x128xbf16>, vector<256x128xf32> -> vector<256x128xf32>
    %c0_21 = arith.constant 0 : index
    %c0_22 = arith.constant 0 : index
    %28 = vector.load %arg9[%c0_21, %c0_22] : memref<1x128xf32, #tpu.memory_space<vmem>>, vector<1x128xf32>
    %29 = vector.broadcast %28 : vector<1x128xf32> to vector<256x128xf32>
    %30 = arith.addf %27, %29 : vector<256x128xf32>
    %c0_23 = arith.constant 0 : index
    %c0_24 = arith.constant 0 : index
    %31 = vector.load %arg10[%c0_23, %c0_24] : memref<256x128xf32, #tpu.memory_space<vmem>>, vector<256x128xf32>
    tpu.vector_store %arg10[%c0_23, %c0_24], %30 {strides = array<i32>} : memref<256x128xf32, #tpu.memory_space<vmem>>, vector<256x128xf32>,
    return
  }
  func.func @transform_0(%arg0: i32) -> (i32, i32) {
    %c0_i32 = arith.constant 0 : i32
    %c0_i32_0 = arith.constant 0 : i32
    return %arg0, %c0_i32 : i32, i32
  }
  func.func @transform_1(%arg0: i32) -> (i32, i32) {
    %c0_i32 = arith.constant 0 : i32
    %c0_i32_0 = arith.constant 0 : i32
    %c0_i32_1 = arith.constant 0 : i32
    return %c0_i32, %c0_i32_0 : i32, i32
  }
  func.func @transform_2(%arg0: i32) -> (i32, i32) {
    %c0_i32 = arith.constant 0 : i32
    %c0_i32_0 = arith.constant 0 : i32
    %c0_i32_1 = arith.constant 0 : i32
    return %c0_i32, %c0_i32_0 : i32, i32
  }
  func.func @transform_3(%arg0: i32) -> (i32, i32) {
    %c0_i32 = arith.constant 0 : i32
    %c0_i32_0 = arith.constant 0 : i32
    %c0_i32_1 = arith.constant 0 : i32
    return %c0_i32, %c0_i32_0 : i32, i32
  }
  func.func @transform_4(%arg0: i32) -> (i32, i32) {
    %c0_i32 = arith.constant 0 : i32
    %c0_i32_0 = arith.constant 0 : i32
    %c0_i32_1 = arith.constant 0 : i32
    return %c0_i32, %c0_i32_0 : i32, i32
  }
  func.func @transform_5(%arg0: i32) -> (i32, i32) {
    %c0_i32 = arith.constant 0 : i32
    %c0_i32_0 = arith.constant 0 : i32
    %c0_i32_1 = arith.constant 0 : i32
    return %c0_i32, %c0_i32_0 : i32, i32
  }
  func.func @transform_6(%arg0: i32) -> (i32, i32) {
    %c0_i32 = arith.constant 0 : i32
    %c0_i32_0 = arith.constant 0 : i32
    %c0_i32_1 = arith.constant 0 : i32
    return %c0_i32, %c0_i32_0 : i32, i32
  }
  func.func @transform_7(%arg0: i32) -> (i32, i32) {
    %c0_i32 = arith.constant 0 : i32
    %c0_i32_0 = arith.constant 0 : i32
    %c0_i32_1 = arith.constant 0 : i32
    return %c0_i32, %c0_i32_0 : i32, i32
  }
  func.func @transform_8(%arg0: i32) -> (i32, i32) {
    %c0_i32 = arith.constant 0 : i32
    %c0_i32_0 = arith.constant 0 : i32
    %c0_i32_1 = arith.constant 0 : i32
    return %c0_i32, %c0_i32_0 : i32, i32
  }
  func.func @transform_9(%arg0: i32) -> (i32, i32) {
    %c0_i32 = arith.constant 0 : i32
    %c0_i32_0 = arith.constant 0 : i32
    return %arg0, %c0_i32 : i32, i32
  }
}

</mosaic_0001>

<llo_original>
// kernel: _forward_impl.1
$region0: #{_forward_impl.1}
  #allocation0 [shape = 'u32[]', space=smem, size = 0x4, offset = 0x4, fixed_abs, tag = 'smem constant byte address 0x4 - core index']
  #allocation1 [shape = 'u32[72,128]{1,0:T(1,128)}', space=vmem, size = 0x9000, scoped, tag = 'internal scratch']
  %s0 = inlined_call_operand.vmem [shape: f32[256,784], index: 0, kind: input, shape index: {}]
  %s1 = inlined_call_operand.vmem [shape: bf16[784,128], index: 1, kind: input, shape index: {}]
  %s2 = inlined_call_operand.vmem [shape: f32[1,128], index: 2, kind: input, shape index: {}]
  %s3 = inlined_call_operand.vmem [shape: bf16[128,128], index: 3, kind: input, shape index: {}]
  %s4 = inlined_call_operand.vmem [shape: f32[1,128], index: 4, kind: input, shape index: {}]
  %s5 = inlined_call_operand.vmem [shape: bf16[128,128], index: 5, kind: input, shape index: {}]
  %s6 = inlined_call_operand.vmem [shape: f32[1,128], index: 6, kind: input, shape index: {}]
  %s7 = inlined_call_operand.vmem [shape: bf16[128,128], index: 7, kind: input, shape index: {}]
  %s8 = inlined_call_operand.vmem [shape: f32[1,128], index: 8, kind: input, shape index: {}]
  %s9 = inlined_call_operand.vmem [shape: f32[256,128], index: 9, kind: output, shape index: {}]
  %s10 = sld [smem:[#allocation0]]
  $region46: #{_forward_impl.1} parent=0
    _
  %s12 = ssub.s32 1, %s10
  %s13 = scalar_select 0, %s12, %s10
  // Predicated region
  $region2: #{_forward_impl.1} parent=0 // pred_check
    _
  $region3: #{_forward_impl.1} parent=0 // pred_check_branch
    %15 = sbr.rel (0) target = $region5
  $region4: #{_forward_impl.1} parent=0 // pred_region
    _
  $region5: #{_forward_impl.1} parent=0 // pred_fallthru
    _
  // Predicated region
  $region6: #{_forward_impl.1} parent=0 // pred_check
    _
  $region7: #{_forward_impl.1} parent=0 // pred_check_branch
    %17 = sbr.rel (0) target = $region9
  $region8: #{_forward_impl.1} parent=0 // pred_region
    _
  $region9: #{_forward_impl.1} parent=0 // pred_fallthru
    _
  // Predicated region
  $region10: #{_forward_impl.1} parent=0 // pred_check
    _
  $region11: #{_forward_impl.1} parent=0 // pred_check_branch
    %19 = sbr.rel (0) target = $region13
  $region12: #{_forward_impl.1} parent=0 // pred_region
    _
  $region13: #{_forward_impl.1} parent=0 // pred_fallthru
    _
  // Predicated region
  $region14: #{_forward_impl.1} parent=0 // pred_check
    _
  $region15: #{_forward_impl.1} parent=0 // pred_check_branch
    %21 = sbr.rel (0) target = $region17
  $region16: #{_forward_impl.1} parent=0 // pred_region
    _
  $region17: #{_forward_impl.1} parent=0 // pred_fallthru
    _
  // Predicated region
  $region18: #{_forward_impl.1} parent=0 // pred_check
    _
  $region19: #{_forward_impl.1} parent=0 // pred_check_branch
    %23 = sbr.rel (0) target = $region21
  $region20: #{_forward_impl.1} parent=0 // pred_region
    _
  $region21: #{_forward_impl.1} parent=0 // pred_fallthru
    _
  // Predicated region
  $region22: #{_forward_impl.1} parent=0 // pred_check
    _
  $region23: #{_forward_impl.1} parent=0 // pred_check_branch
    %25 = sbr.rel (0) target = $region25
  $region24: #{_forward_impl.1} parent=0 // pred_region
    _
  $region25: #{_forward_impl.1} parent=0 // pred_fallthru
    _
  // Predicated region
  $region26: #{_forward_impl.1} parent=0 // pred_check
    _
  $region27: #{_forward_impl.1} parent=0 // pred_check_branch
    %27 = sbr.rel (0) target = $region29
  $region28: #{_forward_impl.1} parent=0 // pred_region
    _
  $region29: #{_forward_impl.1} parent=0 // pred_fallthru
    _
  // Predicated region
  $region30: #{_forward_impl.1} parent=0 // pred_check
    _
  $region31: #{_forward_impl.1} parent=0 // pred_check_branch
    %29 = sbr.rel (0) target = $region33
  $region32: #{_forward_impl.1} parent=0 // pred_region
    _
  $region33: #{_forward_impl.1} parent=0 // pred_fallthru
    _
  // Predicated region
  $region34: #{_forward_impl.1} parent=0 // pred_check
    _
  $region35: #{_forward_impl.1} parent=0 // pred_check_branch
    %31 = sbr.rel (0) target = $region37
  $region36: #{_forward_impl.1} parent=0 // pred_region
    _
  $region37: #{_forward_impl.1} parent=0 // pred_fallthru
    _
  %v33 = vld [vmem:[%s0] sm:$0xff]
  %v34 = vld [vmem:[%s0 + $0x8] sm:$0xff]
  %v35 = vld [vmem:[%s0 + $0x10] sm:$0xff]
  %v36 = vld [vmem:[%s0 + $0x18] sm:$0xff]
  %v37 = vld [vmem:[%s0 + $0x20] sm:$0xff]
  %v38 = vld [vmem:[%s0 + $0x28] sm:$0xff]
  %v39 = vld [vmem:[%s0 + $0x30] sm:$0xff]
  %v40 = vld [vmem:[%s0 + $0x38] sm:$0xff]
  %v41 = vld [vmem:[%s0 + $0x40] sm:$0xff]
  %v42 = vld [vmem:[%s0 + $0x48] sm:$0xff]
  %v43 = vld [vmem:[%s0 + $0x50] sm:$0xff]
  %v44 = vld [vmem:[%s0 + $0x58] sm:$0xff]
  %v45 = vld [vmem:[%s0 + $0x60] sm:$0xff]
  %v46 = vld [vmem:[%s0 + $0x68] sm:$0xff]
  %v47 = vld [vmem:[%s0 + $0x70] sm:$0xff]
  %v48 = vld [vmem:[%s0 + $0x78] sm:$0xff]
  %v49 = vld [vmem:[%s0 + $0x80] sm:$0xff]
  %v50 = vld [vmem:[%s0 + $0x88] sm:$0xff]
  %v51 = vld [vmem:[%s0 + $0x90] sm:$0xff]
  %v52 = vld [vmem:[%s0 + $0x98] sm:$0xff]
  %v53 = vld [vmem:[%s0 + $0xa0] sm:$0xff]
  %v54 = vld [vmem:[%s0 + $0xa8] sm:$0xff]
  %v55 = vld [vmem:[%s0 + $0xb0] sm:$0xff]
  %v56 = vld [vmem:[%s0 + $0xb8] sm:$0xff]
  %v57 = vld [vmem:[%s0 + $0xc0] sm:$0xff]
  %v58 = vld [vmem:[%s0 + $0xc8] sm:$0xff]
  %v59 = vld [vmem:[%s0 + $0xd0] sm:$0xff]
  %v60 = vld [vmem:[%s0 + $0xd8] sm:$0xff]
  %v61 = vld [vmem:[%s0 + $0xe0] sm:$0xff]
  %v62 = vld [vmem:[%s0 + $0xe8] sm:$0xff]
  %v63 = vld [vmem:[%s0 + $0xf0] sm:$0xff]
  %v64 = vld [vmem:[%s0 + $0xf8] sm:$0xff]
  %v65 = vld [vmem:[%s0 + $0x100] sm:$0xff]
  %v66 = vld [vmem:[%s0 + $0x108] sm:$0xff]
  %v67 = vld [vmem:[%s0 + $0x110] sm:$0xff]
  %v68 = vld [vmem:[%s0 + $0x118] sm:$0xff]
  %v69 = vld [vmem:[%s0 + $0x120] sm:$0xff]
  %v70 = vld [vmem:[%s0 + $0x128] sm:$0xff]
  %v71 = vld [vmem:[%s0 + $0x130] sm:$0xff]
  %v72 = vld [vmem:[%s0 + $0x138] sm:$0xff]
  %v73 = vld [vmem:[%s0 + $0x140] sm:$0xff]
  %v74 = vld [vmem:[%s0 + $0x148] sm:$0xff]
  %v75 = vld [vmem:[%s0 + $0x150] sm:$0xff]
  %v76 = vld [vmem:[%s0 + $0x158] sm:$0xff]
  %v77 = vld [vmem:[%s0 + $0x160] sm:$0xff]
  %v78 = vld [vmem:[%s0 + $0x168] sm:$0xff]
  %v79 = vld [vmem:[%s0 + $0x170] sm:$0xff]
  %v80 = vld [vmem:[%s0 + $0x178] sm:$0xff]
  %v81 = vld [vmem:[%s0 + $0x180] sm:$0xff]
  %v82 = vld [vmem:[%s0 + $0x188] sm:$0xff]
  %v83 = vld [vmem:[%s0 + $0x190] sm:$0xff]
  %v84 = vld [vmem:[%s0 + $0x198] sm:$0xff]
  %v85 = vld [vmem:[%s0 + $0x1a0] sm:$0xff]
  %v86 = vld [vmem:[%s0 + $0x1a8] sm:$0xff]
  %v87 = vld [vmem:[%s0 + $0x1b0] sm:$0xff]
  %v88 = vld [vmem:[%s0 + $0x1b8] sm:$0xff]
  %v89 = vld [vmem:[%s0 + $0x1c0] sm:$0xff]
  %v90 = vld [vmem:[%s0 + $0x1c8] sm:$0xff]
  %v91 = vld [vmem:[%s0 + $0x1d0] sm:$0xff]
  %v92 = vld [vmem:[%s0 + $0x1d8] sm:$0xff]
  %v93 = vld [vmem:[%s0 + $0x1e0] sm:$0xff]
  %v94 = vld [vmem:[%s0 + $0x1e8] sm:$0xff]
  %v95 = vld [vmem:[%s0 + $0x1f0] sm:$0xff]
  %v96 = vld [vmem:[%s0 + $0x1f8] sm:$0xff]
  %v97 = vld [vmem:[%s0 + $0x200] sm:$0xff]
  %v98 = vld [vmem:[%s0 + $0x208] sm:$0xff]
  %v99 = vld [vmem:[%s0 + $0x210] sm:$0xff]
  %v100 = vld [vmem:[%s0 + $0x218] sm:$0xff]
  %v101 = vld [vmem:[%s0 + $0x220] sm:$0xff]
  %v102 = vld [vmem:[%s0 + $0x228] sm:$0xff]
  %v103 = vld [vmem:[%s0 + $0x230] sm:$0xff]
  %v104 = vld [vmem:[%s0 + $0x238] sm:$0xff]
  %v105 = vld [vmem:[%s0 + $0x240] sm:$0xff]
  %v106 = vld [vmem:[%s0 + $0x248] sm:$0xff]
  %v107 = vld [vmem:[%s0 + $0x250] sm:$0xff]
  %v108 = vld [vmem:[%s0 + $0x258] sm:$0xff]
  %v109 = vld [vmem:[%s0 + $0x260] sm:$0xff]
  %v110 = vld [vmem:[%s0 + $0x268] sm:$0xff]
  %v111 = vld [vmem:[%s0 + $0x270] sm:$0xff]
  %v112 = vld [vmem:[%s0 + $0x278] sm:$0xff]
  %v113 = vld [vmem:[%s0 + $0x280] sm:$0xff]
  %v114 = vld [vmem:[%s0 + $0x288] sm:$0xff]
  %v115 = vld [vmem:[%s0 + $0x290] sm:$0xff]
  %v116 = vld [vmem:[%s0 + $0x298] sm:$0xff]
  %v117 = vld [vmem:[%s0 + $0x2a0] sm:$0xff]
  %v118 = vld [vmem:[%s0 + $0x2a8] sm:$0xff]
  %v119 = vld [vmem:[%s0 + $0x2b0] sm:$0xff]
  %v120 = vld [vmem:[%s0 + $0x2b8] sm:$0xff]
  %v121 = vld [vmem:[%s0 + $0x2c0] sm:$0xff]
  %v122 = vld [vmem:[%s0 + $0x2c8] sm:$0xff]
  %v123 = vld [vmem:[%s0 + $0x2d0] sm:$0xff]
  %v124 = vld [vmem:[%s0 + $0x2d8] sm:$0xff]
  %v125 = vld [vmem:[%s0 + $0x2e0] sm:$0xff]
  %v126 = vld [vmem:[%s0 + $0x2e8] sm:$0xff]
  %v127 = vld [vmem:[%s0 + $0x2f0] sm:$0xff]
  %v128 = vld [vmem:[%s0 + $0x2f8] sm:$0xff]
  %v129 = vld [vmem:[%s0 + $0x300] sm:$0xff]
  %v130 = vld [vmem:[%s0 + $0x308] sm:$0xff]
  %v131 = vld [vmem:[%s0 + $0x310] sm:$0xff]
  %v132 = vld [vmem:[%s0 + $0x318] sm:$0xff]
  %v133 = vld [vmem:[%s0 + $0x320] sm:$0xff]
  %v134 = vld [vmem:[%s0 + $0x328] sm:$0xff]
  %v135 = vld [vmem:[%s0 + $0x330] sm:$0xff]
  %v136 = vld [vmem:[%s0 + $0x338] sm:$0xff]
  %v137 = vld [vmem:[%s0 + $0x340] sm:$0xff]
  %v138 = vld [vmem:[%s0 + $0x348] sm:$0xff]
  %v139 = vld [vmem:[%s0 + $0x350] sm:$0xff]
  %v140 = vld [vmem:[%s0 + $0x358] sm:$0xff]
  %v141 = vld [vmem:[%s0 + $0x360] sm:$0xff]
  %v142 = vld [vmem:[%s0 + $0x368] sm:$0xff]
  %v143 = vld [vmem:[%s0 + $0x370] sm:$0xff]
  %v144 = vld [vmem:[%s0 + $0x378] sm:$0xff]
  %v145 = vld [vmem:[%s0 + $0x380] sm:$0xff]
  %v146 = vld [vmem:[%s0 + $0x388] sm:$0xff]
  %v147 = vld [vmem:[%s0 + $0x390] sm:$0xff]
  %v148 = vld [vmem:[%s0 + $0x398] sm:$0xff]
  %v149 = vld [vmem:[%s0 + $0x3a0] sm:$0xff]
  %v150 = vld [vmem:[%s0 + $0x3a8] sm:$0xff]
  %v151 = vld [vmem:[%s0 + $0x3b0] sm:$0xff]
  %v152 = vld [vmem:[%s0 + $0x3b8] sm:$0xff]
  %v153 = vld [vmem:[%s0 + $0x3c0] sm:$0xff]
  %v154 = vld [vmem:[%s0 + $0x3c8] sm:$0xff]
  %v155 = vld [vmem:[%s0 + $0x3d0] sm:$0xff]
  %v156 = vld [vmem:[%s0 + $0x3d8] sm:$0xff]
  %v157 = vld [vmem:[%s0 + $0x3e0] sm:$0xff]
  %v158 = vld [vmem:[%s0 + $0x3e8] sm:$0xff]
  %v159 = vld [vmem:[%s0 + $0x3f0] sm:$0xff]
  %v160 = vld [vmem:[%s0 + $0x3f8] sm:$0xff]
  %v161 = vld [vmem:[%s0 + $0x400] sm:$0xff]
  %v162 = vld [vmem:[%s0 + $0x408] sm:$0xff]
  %v163 = vld [vmem:[%s0 + $0x410] sm:$0xff]
  %v164 = vld [vmem:[%s0 + $0x418] sm:$0xff]
  %v165 = vld [vmem:[%s0 + $0x420] sm:$0xff]
  %v166 = vld [vmem:[%s0 + $0x428] sm:$0xff]
  %v167 = vld [vmem:[%s0 + $0x430] sm:$0xff]
  %v168 = vld [vmem:[%s0 + $0x438] sm:$0xff]
  %v169 = vld [vmem:[%s0 + $0x440] sm:$0xff]
  %v170 = vld [vmem:[%s0 + $0x448] sm:$0xff]
  %v171 = vld [vmem:[%s0 + $0x450] sm:$0xff]
  %v172 = vld [vmem:[%s0 + $0x458] sm:$0xff]
  %v173 = vld [vmem:[%s0 + $0x460] sm:$0xff]
  %v174 = vld [vmem:[%s0 + $0x468] sm:$0xff]
  %v175 = vld [vmem:[%s0 + $0x470] sm:$0xff]
  %v176 = vld [vmem:[%s0 + $0x478] sm:$0xff]
  %v177 = vld [vmem:[%s0 + $0x480] sm:$0xff]
  %v178 = vld [vmem:[%s0 + $0x488] sm:$0xff]
  %v179 = vld [vmem:[%s0 + $0x490] sm:$0xff]
  %v180 = vld [vmem:[%s0 + $0x498] sm:$0xff]
  %v181 = vld [vmem:[%s0 + $0x4a0] sm:$0xff]
  %v182 = vld [vmem:[%s0 + $0x4a8] sm:$0xff]
  %v183 = vld [vmem:[%s0 + $0x4b0] sm:$0xff]
  %v184 = vld [vmem:[%s0 + $0x4b8] sm:$0xff]
  %v185 = vld [vmem:[%s0 + $0x4c0] sm:$0xff]
  %v186 = vld [vmem:[%s0 + $0x4c8] sm:$0xff]
  %v187 = vld [vmem:[%s0 + $0x4d0] sm:$0xff]
  %v188 = vld [vmem:[%s0 + $0x4d8] sm:$0xff]
  %v189 = vld [vmem:[%s0 + $0x4e0] sm:$0xff]
  %v190 = vld [vmem:[%s0 + $0x4e8] sm:$0xff]
  %v191 = vld [vmem:[%s0 + $0x4f0] sm:$0xff]
  %v192 = vld [vmem:[%s0 + $0x4f8] sm:$0xff]
  %v193 = vld [vmem:[%s0 + $0x500] sm:$0xff]
  %v194 = vld [vmem:[%s0 + $0x508] sm:$0xff]
  %v195 = vld [vmem:[%s0 + $0x510] sm:$0xff]
  %v196 = vld [vmem:[%s0 + $0x518] sm:$0xff]
  %v197 = vld [vmem:[%s0 + $0x520] sm:$0xff]
  %v198 = vld [vmem:[%s0 + $0x528] sm:$0xff]
  %v199 = vld [vmem:[%s0 + $0x530] sm:$0xff]
  %v200 = vld [vmem:[%s0 + $0x538] sm:$0xff]
  %v201 = vld [vmem:[%s0 + $0x540] sm:$0xff]
  %v202 = vld [vmem:[%s0 + $0x548] sm:$0xff]
  %v203 = vld [vmem:[%s0 + $0x550] sm:$0xff]
  %v204 = vld [vmem:[%s0 + $0x558] sm:$0xff]
  %v205 = vld [vmem:[%s0 + $0x560] sm:$0xff]
  %v206 = vld [vmem:[%s0 + $0x568] sm:$0xff]
  %v207 = vld [vmem:[%s0 + $0x570] sm:$0xff]
  %v208 = vld [vmem:[%s0 + $0x578] sm:$0xff]
  %v209 = vld [vmem:[%s0 + $0x580] sm:$0xff]
  %v210 = vld [vmem:[%s0 + $0x588] sm:$0xff]
  %v211 = vld [vmem:[%s0 + $0x590] sm:$0xff]
  %v212 = vld [vmem:[%s0 + $0x598] sm:$0xff]
  %v213 = vld [vmem:[%s0 + $0x5a0] sm:$0xff]
  %v214 = vld [vmem:[%s0 + $0x5a8] sm:$0xff]
  %v215 = vld [vmem:[%s0 + $0x5b0] sm:$0xff]
  %v216 = vld [vmem:[%s0 + $0x5b8] sm:$0xff]
  %v217 = vld [vmem:[%s0 + $0x5c0] sm:$0xff]
  %v218 = vld [vmem:[%s0 + $0x5c8] sm:$0xff]
  %v219 = vld [vmem:[%s0 + $0x5d0] sm:$0xff]
  %v220 = vld [vmem:[%s0 + $0x5d8] sm:$0xff]
  %v221 = vld [vmem:[%s0 + $0x5e0] sm:$0xff]
  %v222 = vld [vmem:[%s0 + $0x5e8] sm:$0xff]
  %v223 = vld [vmem:[%s0 + $0x5f0] sm:$0xff]
  %v224 = vld [vmem:[%s0 + $0x5f8] sm:$0xff]
  %v225 = vld [vmem:[%s0 + $0x600] sm:$0xff]
  %v226 = vld [vmem:[%s0 + $0x608] sm:$0xff]
  %v227 = vld [vmem:[%s0 + $0x610] sm:$0xff]
  %v228 = vld [vmem:[%s0 + $0x618] sm:$0xff]
  %v229 = vld [vmem:[%s0 + $0x620] sm:$0xff]
  %v230 = vld [vmem:[%s0 + $0x628] sm:$0xff]
  %v231 = vld [vmem:[%s0 + $0x630] sm:$0xff]
  %v232 = vld [vmem:[%s0 + $0x638] sm:$0xff]
  %v233 = vld [vmem:[%s0 + $0x640] sm:$0xff]
  %v234 = vld [vmem:[%s0 + $0x648] sm:$0xff]
  %v235 = vld [vmem:[%s0 + $0x650] sm:$0xff]
  %v236 = vld [vmem:[%s0 + $0x658] sm:$0xff]
  %v237 = vld [vmem:[%s0 + $0x660] sm:$0xff]
  %v238 = vld [vmem:[%s0 + $0x668] sm:$0xff]
  %v239 = vld [vmem:[%s0 + $0x670] sm:$0xff]
  %v240 = vld [vmem:[%s0 + $0x678] sm:$0xff]
  %v241 = vld [vmem:[%s0 + $0x680] sm:$0xff]
  %v242 = vld [vmem:[%s0 + $0x688] sm:$0xff]
  %v243 = vld [vmem:[%s0 + $0x690] sm:$0xff]
  %v244 = vld [vmem:[%s0 + $0x698] sm:$0xff]
  %v245 = vld [vmem:[%s0 + $0x6a0] sm:$0xff]
  %v246 = vld [vmem:[%s0 + $0x6a8] sm:$0xff]
  %v247 = vld [vmem:[%s0 + $0x6b0] sm:$0xff]
  %v248 = vld [vmem:[%s0 + $0x6b8] sm:$0xff]
  %v249 = vld [vmem:[%s0 + $0x6c0] sm:$0xff]
  %v250 = vld [vmem:[%s0 + $0x6c8] sm:$0xff]
  %v251 = vld [vmem:[%s0 + $0x6d0] sm:$0xff]
  %v252 = vld [vmem:[%s0 + $0x6d8] sm:$0xff]
  %v253 = vld [vmem:[%s0 + $0x6e0] sm:$0xff]
  %v254 = vld [vmem:[%s0 + $0x6e8] sm:$0xff]
  %v255 = vld [vmem:[%s0 + $0x6f0] sm:$0xff]
  %v256 = vld [vmem:[%s0 + $0x6f8] sm:$0xff]
  %v257 = vpack.c.bf16 %v40, %v33
  %v258 = vpack.c.bf16 %v41, %v34
  %v259 = vpack.c.bf16 %v42, %v35
  %v260 = vpack.c.bf16 %v43, %v36
  %v261 = vpack.c.bf16 %v44, %v37
  %v262 = vpack.c.bf16 %v45, %v38
  %v263 = vpack.c.bf16 %v46, %v39
  %v264 = vpack.c.bf16 %v54, %v47
  %v265 = vpack.c.bf16 %v55, %v48
  %v266 = vpack.c.bf16 %v56, %v49
  %v267 = vpack.c.bf16 %v57, %v50
  %v268 = vpack.c.bf16 %v58, %v51
  %v269 = vpack.c.bf16 %v59, %v52
  %v270 = vpack.c.bf16 %v60, %v53
  %v271 = vpack.c.bf16 %v68, %v61
  %v272 = vpack.c.bf16 %v69, %v62
  %v273 = vpack.c.bf16 %v70, %v63
  %v274 = vpack.c.bf16 %v71, %v64
  %v275 = vpack.c.bf16 %v72, %v65
  %v276 = vpack.c.bf16 %v73, %v66
  %v277 = vpack.c.bf16 %v74, %v67
  %v278 = vpack.c.bf16 %v82, %v75
  %v279 = vpack.c.bf16 %v83, %v76
  %v280 = vpack.c.bf16 %v84, %v77
  %v281 = vpack.c.bf16 %v85, %v78
  %v282 = vpack.c.bf16 %v86, %v79
  %v283 = vpack.c.bf16 %v87, %v80
  %v284 = vpack.c.bf16 %v88, %v81
  %v285 = vpack.c.bf16 %v96, %v89
  %v286 = vpack.c.bf16 %v97, %v90
  %v287 = vpack.c.bf16 %v98, %v91
  %v288 = vpack.c.bf16 %v99, %v92
  %v289 = vpack.c.bf16 %v100, %v93
  %v290 = vpack.c.bf16 %v101, %v94
  %v291 = vpack.c.bf16 %v102, %v95
  %v292 = vpack.c.bf16 %v110, %v103
  %v293 = vpack.c.bf16 %v111, %v104
  %v294 = vpack.c.bf16 %v112, %v105
  %v295 = vpack.c.bf16 %v113, %v106
  %v296 = vpack.c.bf16 %v114, %v107
  %v297 = vpack.c.bf16 %v115, %v108
  %v298 = vpack.c.bf16 %v116, %v109
  %v299 = vpack.c.bf16 %v124, %v117
  %v300 = vpack.c.bf16 %v125, %v118
  %v301 = vpack.c.bf16 %v126, %v119
  %v302 = vpack.c.bf16 %v127, %v120
  %v303 = vpack.c.bf16 %v128, %v121
  %v304 = vpack.c.bf16 %v129, %v122
  %v305 = vpack.c.bf16 %v130, %v123
  %v306 = vpack.c.bf16 %v138, %v131
  %v307 = vpack.c.bf16 %v139, %v132
  %v308 = vpack.c.bf16 %v140, %v133
  %v309 = vpack.c.bf16 %v141, %v134
  %v310 = vpack.c.bf16 %v142, %v135
  %v311 = vpack.c.bf16 %v143, %v136
  %v312 = vpack.c.bf16 %v144, %v137
  %v313 = vpack.c.bf16 %v152, %v145
  %v314 = vpack.c.bf16 %v153, %v146
  %v315 = vpack.c.bf16 %v154, %v147
  %v316 = vpack.c.bf16 %v155, %v148
  %v317 = vpack.c.bf16 %v156, %v149
  %v318 = vpack.c.bf16 %v157, %v150
  %v319 = vpack.c.bf16 %v158, %v151
  %v320 = vpack.c.bf16 %v166, %v159
  %v321 = vpack.c.bf16 %v167, %v160
  %v322 = vpack.c.bf16 %v168, %v161
  %v323 = vpack.c.bf16 %v169, %v162
  %v324 = vpack.c.bf16 %v170, %v163
  %v325 = vpack.c.bf16 %v171, %v164
  %v326 = vpack.c.bf16 %v172, %v165
  %v327 = vpack.c.bf16 %v180, %v173
  %v328 = vpack.c.bf16 %v181, %v174
  %v329 = vpack.c.bf16 %v182, %v175
  %v330 = vpack.c.bf16 %v183, %v176
  %v331 = vpack.c.bf16 %v184, %v177
  %v332 = vpack.c.bf16 %v185, %v178
  %v333 = vpack.c.bf16 %v186, %v179
  %v334 = vpack.c.bf16 %v194, %v187
  %v335 = vpack.c.bf16 %v195, %v188
  %v336 = vpack.c.bf16 %v196, %v189
  %v337 = vpack.c.bf16 %v197, %v190
  %v338 = vpack.c.bf16 %v198, %v191
  %v339 = vpack.c.bf16 %v199, %v192
  %v340 = vpack.c.bf16 %v200, %v193
  %v341 = vpack.c.bf16 %v208, %v201
  %v342 = vpack.c.bf16 %v209, %v202
  %v343 = vpack.c.bf16 %v210, %v203
  %v344 = vpack.c.bf16 %v211, %v204
  %v345 = vpack.c.bf16 %v212, %v205
  %v346 = vpack.c.bf16 %v213, %v206
  %v347 = vpack.c.bf16 %v214, %v207
  %v348 = vpack.c.bf16 %v222, %v215
  %v349 = vpack.c.bf16 %v223, %v216
  %v350 = vpack.c.bf16 %v224, %v217
  %v351 = vpack.c.bf16 %v225, %v218
  %v352 = vpack.c.bf16 %v226, %v219
  %v353 = vpack.c.bf16 %v227, %v220
  %v354 = vpack.c.bf16 %v228, %v221
  %v355 = vpack.c.bf16 %v236, %v229
  %v356 = vpack.c.bf16 %v237, %v230
  %v357 = vpack.c.bf16 %v238, %v231
  %v358 = vpack.c.bf16 %v239, %v232
  %v359 = vpack.c.bf16 %v240, %v233
  %v360 = vpack.c.bf16 %v241, %v234
  %v361 = vpack.c.bf16 %v242, %v235
  %v362 = vpack.c.bf16 %v250, %v243
  %v363 = vpack.c.bf16 %v251, %v244
  %v364 = vpack.c.bf16 %v252, %v245
  %v365 = vpack.c.bf16 %v253, %v246
  %v366 = vpack.c.bf16 %v254, %v247
  %v367 = vpack.c.bf16 %v255, %v248
  %v368 = vpack.c.bf16 %v256, %v249
  %v369 = vld [vmem:[%s1] sm:$0xf]
  %v370 = vld [vmem:[%s1 + $0x4] sm:$0xf]
  %v371 = vld [vmem:[%s1 + $0x8] sm:$0xf]
  %v372 = vld [vmem:[%s1 + $0xc] sm:$0xf]
  %v373 = vld [vmem:[%s1 + $0x10] sm:$0xf]
  %v374 = vld [vmem:[%s1 + $0x14] sm:$0xf]
  %v375 = vld [vmem:[%s1 + $0x18] sm:$0xf]
  %v376 = vld [vmem:[%s1 + $0x1c] sm:$0xf]
  %v377 = vld [vmem:[%s1 + $0x20] sm:$0xf]
  %v378 = vld [vmem:[%s1 + $0x24] sm:$0xf]
  %v379 = vld [vmem:[%s1 + $0x28] sm:$0xf]
  %v380 = vld [vmem:[%s1 + $0x2c] sm:$0xf]
  %v381 = vld [vmem:[%s1 + $0x30] sm:$0xf]
  %v382 = vld [vmem:[%s1 + $0x34] sm:$0xf]
  %v383 = vld [vmem:[%s1 + $0x38] sm:$0xf]
  %v384 = vld [vmem:[%s1 + $0x3c] sm:$0xf]
  %v385 = vld [vmem:[%s1 + $0x40] sm:$0xf]
  %v386 = vld [vmem:[%s1 + $0x44] sm:$0xf]
  %v387 = vld [vmem:[%s1 + $0x48] sm:$0xf]
  %v388 = vld [vmem:[%s1 + $0x4c] sm:$0xf]
  %v389 = vld [vmem:[%s1 + $0x50] sm:$0xf]
  %v390 = vld [vmem:[%s1 + $0x54] sm:$0xf]
  %v391 = vld [vmem:[%s1 + $0x58] sm:$0xf]
  %v392 = vld [vmem:[%s1 + $0x5c] sm:$0xf]
  %v393 = vld [vmem:[%s1 + $0x60] sm:$0xf]
  %v394 = vld [vmem:[%s1 + $0x64] sm:$0xf]
  %v395 = vld [vmem:[%s1 + $0x68] sm:$0xf]
  %v396 = vld [vmem:[%s1 + $0x6c] sm:$0xf]
  %v397 = vld [vmem:[%s1 + $0x70] sm:$0xf]
  %v398 = vld [vmem:[%s1 + $0x74] sm:$0xf]
  %v399 = vld [vmem:[%s1 + $0x78] sm:$0xf]
  %v400 = vld [vmem:[%s1 + $0x7c] sm:$0xf]
  %v401 = vld [vmem:[%s1 + $0x80] sm:$0xf]
  %v402 = vld [vmem:[%s1 + $0x84] sm:$0xf]
  %v403 = vld [vmem:[%s1 + $0x88] sm:$0xf]
  %v404 = vld [vmem:[%s1 + $0x8c] sm:$0xf]
  %v405 = vld [vmem:[%s1 + $0x90] sm:$0xf]
  %v406 = vld [vmem:[%s1 + $0x94] sm:$0xf]
  %v407 = vld [vmem:[%s1 + $0x98] sm:$0xf]
  %v408 = vld [vmem:[%s1 + $0x9c] sm:$0xf]
  %v409 = vld [vmem:[%s1 + $0xa0] sm:$0xf]
  %v410 = vld [vmem:[%s1 + $0xa4] sm:$0xf]
  %v411 = vld [vmem:[%s1 + $0xa8] sm:$0xf]
  %v412 = vld [vmem:[%s1 + $0xac] sm:$0xf]
  %v413 = vld [vmem:[%s1 + $0xb0] sm:$0xf]
  %v414 = vld [vmem:[%s1 + $0xb4] sm:$0xf]
  %v415 = vld [vmem:[%s1 + $0xb8] sm:$0xf]
  %v416 = vld [vmem:[%s1 + $0xbc] sm:$0xf]
  %v417 = vld [vmem:[%s1 + $0xc0] sm:$0xf]
  %v418 = vld [vmem:[%s1 + $0xc4] sm:$0xf]
  %v419 = vld [vmem:[%s1 + $0xc8] sm:$0xf]
  %v420 = vld [vmem:[%s1 + $0xcc] sm:$0xf]
  %v421 = vld [vmem:[%s1 + $0xd0] sm:$0xf]
  %v422 = vld [vmem:[%s1 + $0xd4] sm:$0xf]
  %v423 = vld [vmem:[%s1 + $0xd8] sm:$0xf]
  %v424 = vld [vmem:[%s1 + $0xdc] sm:$0xf]
  %v425 = vld [vmem:[%s1 + $0xe0] sm:$0xf]
  %v426 = vld [vmem:[%s1 + $0xe4] sm:$0xf]
  %v427 = vld [vmem:[%s1 + $0xe8] sm:$0xf]
  %v428 = vld [vmem:[%s1 + $0xec] sm:$0xf]
  %v429 = vld [vmem:[%s1 + $0xf0] sm:$0xf]
  %v430 = vld [vmem:[%s1 + $0xf4] sm:$0xf]
  %v431 = vld [vmem:[%s1 + $0xf8] sm:$0xf]
  %v432 = vld [vmem:[%s1 + $0xfc] sm:$0xf]
  %v433 = vld [vmem:[%s1 + $0x100] sm:$0xf]
  %v434 = vld [vmem:[%s1 + $0x104] sm:$0xf]
  %v435 = vld [vmem:[%s1 + $0x108] sm:$0xf]
  %v436 = vld [vmem:[%s1 + $0x10c] sm:$0xf]
  %v437 = vld [vmem:[%s1 + $0x110] sm:$0xf]
  %v438 = vld [vmem:[%s1 + $0x114] sm:$0xf]
  %v439 = vld [vmem:[%s1 + $0x118] sm:$0xf]
  %v440 = vld [vmem:[%s1 + $0x11c] sm:$0xf]
  %v441 = vld [vmem:[%s1 + $0x120] sm:$0xf]
  %v442 = vld [vmem:[%s1 + $0x124] sm:$0xf]
  %v443 = vld [vmem:[%s1 + $0x128] sm:$0xf]
  %v444 = vld [vmem:[%s1 + $0x12c] sm:$0xf]
  %v445 = vld [vmem:[%s1 + $0x130] sm:$0xf]
  %v446 = vld [vmem:[%s1 + $0x134] sm:$0xf]
  %v447 = vld [vmem:[%s1 + $0x138] sm:$0xf]
  %v448 = vld [vmem:[%s1 + $0x13c] sm:$0xf]
  %v449 = vld [vmem:[%s1 + $0x140] sm:$0xf]
  %v450 = vld [vmem:[%s1 + $0x144] sm:$0xf]
  %v451 = vld [vmem:[%s1 + $0x148] sm:$0xf]
  %v452 = vld [vmem:[%s1 + $0x14c] sm:$0xf]
  %v453 = vld [vmem:[%s1 + $0x150] sm:$0xf]
  %v454 = vld [vmem:[%s1 + $0x154] sm:$0xf]
  %v455 = vld [vmem:[%s1 + $0x158] sm:$0xf]
  %v456 = vld [vmem:[%s1 + $0x15c] sm:$0xf]
  %v457 = vld [vmem:[%s1 + $0x160] sm:$0xf]
  %v458 = vld [vmem:[%s1 + $0x164] sm:$0xf]
  %v459 = vld [vmem:[%s1 + $0x168] sm:$0xf]
  %v460 = vld [vmem:[%s1 + $0x16c] sm:$0xf]
  %v461 = vld [vmem:[%s1 + $0x170] sm:$0xf]
  %v462 = vld [vmem:[%s1 + $0x174] sm:$0xf]
  %v463 = vld [vmem:[%s1 + $0x178] sm:$0xf]
  %v464 = vld [vmem:[%s1 + $0x17c] sm:$0xf]
  %v465 = vld [vmem:[%s1 + $0x180] sm:$0xf]
  %v466 = vld [vmem:[%s1 + $0x184] sm:$0xf]
  %v467 = vld [vmem:[%s2] sm:$0x1]
  %v469 = vperm.slane %v467, 0
  %v569 = vunpack.c.l.b16 %v369
  %v570 = vunpack.c.l.b16 %v370
  %v571 = vunpack.c.l.b16 %v371
  %v572 = vunpack.c.l.b16 %v372
  %v573 = vunpack.c.l.b16 %v373
  %v574 = vunpack.c.l.b16 %v374
  %v575 = vunpack.c.l.b16 %v375
  %v576 = vunpack.c.l.b16 %v376
  %v577 = vunpack.c.l.b16 %v377
  %v578 = vunpack.c.l.b16 %v378
  %v579 = vunpack.c.l.b16 %v379
  %v580 = vunpack.c.l.b16 %v380
  %v581 = vunpack.c.l.b16 %v381
  %v582 = vunpack.c.l.b16 %v382
  %v583 = vunpack.c.l.b16 %v383
  %v584 = vunpack.c.l.b16 %v384
  %v585 = vunpack.c.l.b16 %v385
  %v586 = vunpack.c.l.b16 %v386
  %v587 = vunpack.c.l.b16 %v387
  %v588 = vunpack.c.l.b16 %v388
  %v589 = vunpack.c.l.b16 %v389
  %v590 = vunpack.c.l.b16 %v390
  %v591 = vunpack.c.l.b16 %v391
  %v592 = vunpack.c.l.b16 %v392
  %v593 = vunpack.c.l.b16 %v393
  %v594 = vunpack.c.l.b16 %v394
  %v595 = vunpack.c.l.b16 %v395
  %v596 = vunpack.c.l.b16 %v396
  %v597 = vunpack.c.l.b16 %v397
  %v598 = vunpack.c.l.b16 %v398
  %v599 = vunpack.c.l.b16 %v399
  %v600 = vunpack.c.l.b16 %v400
  %v601 = vunpack.c.l.b16 %v401
  %v602 = vunpack.c.l.b16 %v402
  %v603 = vunpack.c.l.b16 %v403
  %v604 = vunpack.c.l.b16 %v404
  %v605 = vunpack.c.l.b16 %v405
  %v606 = vunpack.c.l.b16 %v406
  %v607 = vunpack.c.l.b16 %v407
  %v608 = vunpack.c.l.b16 %v408
  %v609 = vunpack.c.l.b16 %v409
  %v610 = vunpack.c.l.b16 %v410
  %v611 = vunpack.c.l.b16 %v411
  %v612 = vunpack.c.l.b16 %v412
  %v613 = vunpack.c.l.b16 %v413
  %v614 = vunpack.c.l.b16 %v414
  %v615 = vunpack.c.l.b16 %v415
  %v616 = vunpack.c.l.b16 %v416
  %v617 = vunpack.c.l.b16 %v417
  %v618 = vunpack.c.l.b16 %v418
  %v619 = vunpack.c.l.b16 %v419
  %v620 = vunpack.c.l.b16 %v420
  %v621 = vunpack.c.l.b16 %v421
  %v622 = vunpack.c.l.b16 %v422
  %v623 = vunpack.c.l.b16 %v423
  %v624 = vunpack.c.l.b16 %v424
  %v625 = vunpack.c.l.b16 %v425
  %v626 = vunpack.c.l.b16 %v426
  %v627 = vunpack.c.l.b16 %v427
  %v628 = vunpack.c.l.b16 %v428
  %v629 = vunpack.c.l.b16 %v429
  %v630 = vunpack.c.l.b16 %v430
  %v631 = vunpack.c.l.b16 %v431
  %v632 = vunpack.c.l.b16 %v432
  %v633 = vunpack.c.l.b16 %v433
  %v634 = vunpack.c.l.b16 %v434
  %v635 = vunpack.c.l.b16 %v435
  %v636 = vunpack.c.l.b16 %v436
  %v637 = vunpack.c.l.b16 %v437
  %v638 = vunpack.c.l.b16 %v438
  %v639 = vunpack.c.l.b16 %v439
  %v640 = vunpack.c.l.b16 %v440
  %v641 = vunpack.c.l.b16 %v441
  %v642 = vunpack.c.l.b16 %v442
  %v643 = vunpack.c.l.b16 %v443
  %v644 = vunpack.c.l.b16 %v444
  %v645 = vunpack.c.l.b16 %v445
  %v646 = vunpack.c.l.b16 %v446
  %v647 = vunpack.c.l.b16 %v447
  %v648 = vunpack.c.l.b16 %v448
  %v649 = vunpack.c.l.b16 %v449
  %v650 = vunpack.c.l.b16 %v450
  %v651 = vunpack.c.l.b16 %v451
  %v652 = vunpack.c.l.b16 %v452
  %v653 = vunpack.c.l.b16 %v453
  %v654 = vunpack.c.l.b16 %v454
  %v655 = vunpack.c.l.b16 %v455
  %v656 = vunpack.c.l.b16 %v456
  %v657 = vunpack.c.l.b16 %v457
  %v658 = vunpack.c.l.b16 %v458
  %v659 = vunpack.c.l.b16 %v459
  %v660 = vunpack.c.l.b16 %v460
  %v661 = vunpack.c.l.b16 %v461
  %v662 = vunpack.c.l.b16 %v462
  %v663 = vunpack.c.l.b16 %v463
  %v664 = vunpack.c.l.b16 %v464
  %v665 = vunpack.c.l.b16 %v465
  %v666 = vunpack.c.l.b16 %v466
  %v667 = vpack.c.b16 %v570, %v569
  %v668 = vpack.c.b16 %v572, %v571
  %v669 = vpack.c.b16 %v574, %v573
  %v670 = vpack.c.b16 %v576, %v575
  %v671 = vpack.c.b16 %v578, %v577
  %v672 = vpack.c.b16 %v580, %v579
  %v673 = vpack.c.b16 %v582, %v581
  %v674 = vpack.c.b16 %v584, %v583
  %v675 = vpack.c.b16 %v586, %v585
  %v676 = vpack.c.b16 %v588, %v587
  %v677 = vpack.c.b16 %v590, %v589
  %v678 = vpack.c.b16 %v592, %v591
  %v679 = vpack.c.b16 %v594, %v593
  %v680 = vpack.c.b16 %v596, %v595
  %v681 = vpack.c.b16 %v598, %v597
  %v682 = vpack.c.b16 %v600, %v599
  %v683 = vpack.c.b16 %v602, %v601
  %v684 = vpack.c.b16 %v604, %v603
  %v685 = vpack.c.b16 %v606, %v605
  %v686 = vpack.c.b16 %v608, %v607
  %v687 = vpack.c.b16 %v610, %v609
  %v688 = vpack.c.b16 %v612, %v611
  %v689 = vpack.c.b16 %v614, %v613
  %v690 = vpack.c.b16 %v616, %v615
  %v691 = vpack.c.b16 %v618, %v617
  %v692 = vpack.c.b16 %v620, %v619
  %v693 = vpack.c.b16 %v622, %v621
  %v694 = vpack.c.b16 %v624, %v623
  %v695 = vpack.c.b16 %v626, %v625
  %v696 = vpack.c.b16 %v628, %v627
  %v697 = vpack.c.b16 %v630, %v629
  %v698 = vpack.c.b16 %v632, %v631
  %v699 = vpack.c.b16 %v634, %v633
  %v700 = vpack.c.b16 %v636, %v635
  %v701 = vpack.c.b16 %v638, %v637
  %v702 = vpack.c.b16 %v640, %v639
  %v703 = vpack.c.b16 %v642, %v641
  %v704 = vpack.c.b16 %v644, %v643
  %v705 = vpack.c.b16 %v646, %v645
  %v706 = vpack.c.b16 %v648, %v647
  %v707 = vpack.c.b16 %v650, %v649
  %v708 = vpack.c.b16 %v652, %v651
  %v709 = vpack.c.b16 %v654, %v653
  %v710 = vpack.c.b16 %v656, %v655
  %v711 = vpack.c.b16 %v658, %v657
  %v712 = vpack.c.b16 %v660, %v659
  %v713 = vpack.c.b16 %v662, %v661
  %v714 = vpack.c.b16 %v664, %v663
  %v715 = vpack.c.b16 %v666, %v665
  %vm765 = vcmask 130048
  %v767 = vsel %vm765, %v263, 0
  %v770 = vsel %vm765, %v270, 0
  %v773 = vsel %vm765, %v277, 0
  %v776 = vsel %vm765, %v284, 0
  %v779 = vsel %vm765, %v291, 0
  %v782 = vsel %vm765, %v298, 0
  %v785 = vsel %vm765, %v305, 0
  %v788 = vsel %vm765, %v312, 0
  %v791 = vsel %vm765, %v319, 0
  %v794 = vsel %vm765, %v326, 0
  %v797 = vsel %vm765, %v333, 0
  %v800 = vsel %vm765, %v340, 0
  %v803 = vsel %vm765, %v347, 0
  %v806 = vsel %vm765, %v354, 0
  %v809 = vsel %vm765, %v361, 0
  %v812 = vsel %vm765, %v368, 0
  %814 = vmatpush.bf16.msra.mxu0 %v674
  %815 = vmatpush.bf16.msra.mxu0 %v673
  %816 = vmatpush.bf16.msra.mxu0 %v672
  %817 = vmatpush.bf16.msra.mxu0 %v671
  %818 = vmatpush.bf16.msra.mxu0 %v670
  %819 = vmatpush.bf16.msra.mxu0 %v669
  %820 = vmatpush.bf16.msra.mxu0 %v668
  %821 = vmatpush.bf16.msra.mxu0 %v667
  %822 = vmatmul.bf16.gmra.mxu0 %v257
  %v823 = vpop.f32.mrf.mxu0
  %v824 = vadd.f32 %v469, %v823
  %v825 = vpop.f32.mrf.mxu0
  %v826 = vadd.f32 %v469, %v825
  %827 = vmatmul.bf16.gmra.mxu0 %v264
  %v828 = vpop.f32.mrf.mxu0
  %v829 = vadd.f32 %v469, %v828
  %v830 = vpop.f32.mrf.mxu0
  %v831 = vadd.f32 %v469, %v830
  %832 = vmatmul.bf16.gmra.mxu0 %v271
  %v833 = vpop.f32.mrf.mxu0
  %v834 = vadd.f32 %v469, %v833
  %v835 = vpop.f32.mrf.mxu0
  %v836 = vadd.f32 %v469, %v835
  %837 = vmatmul.bf16.gmra.mxu0 %v278
  %v838 = vpop.f32.mrf.mxu0
  %v839 = vadd.f32 %v469, %v838
  %v840 = vpop.f32.mrf.mxu0
  %v841 = vadd.f32 %v469, %v840
  %842 = vmatmul.bf16.gmra.mxu0 %v285
  %v843 = vpop.f32.mrf.mxu0
  %v844 = vadd.f32 %v469, %v843
  %v845 = vpop.f32.mrf.mxu0
  %v846 = vadd.f32 %v469, %v845
  %847 = vmatmul.bf16.gmra.mxu0 %v292
  %v848 = vpop.f32.mrf.mxu0
  %v849 = vadd.f32 %v469, %v848
  %v850 = vpop.f32.mrf.mxu0
  %v851 = vadd.f32 %v469, %v850
  %852 = vmatmul.bf16.gmra.mxu0 %v299
  %v853 = vpop.f32.mrf.mxu0
  %v854 = vadd.f32 %v469, %v853
  %v855 = vpop.f32.mrf.mxu0
  %v856 = vadd.f32 %v469, %v855
  %857 = vmatmul.bf16.gmra.mxu0 %v306
  %v858 = vpop.f32.mrf.mxu0
  %v859 = vadd.f32 %v469, %v858
  %v860 = vpop.f32.mrf.mxu0
  %v861 = vadd.f32 %v469, %v860
  %862 = vmatmul.bf16.gmra.mxu0 %v313
  %v863 = vpop.f32.mrf.mxu0
  %v864 = vadd.f32 %v469, %v863
  %v865 = vpop.f32.mrf.mxu0
  %v866 = vadd.f32 %v469, %v865
  %867 = vmatmul.bf16.gmra.mxu0 %v320
  %v868 = vpop.f32.mrf.mxu0
  %v869 = vadd.f32 %v469, %v868
  %v870 = vpop.f32.mrf.mxu0
  %v871 = vadd.f32 %v469, %v870
  %872 = vmatmul.bf16.gmra.mxu0 %v327
  %v873 = vpop.f32.mrf.mxu0
  %v874 = vadd.f32 %v469, %v873
  %v875 = vpop.f32.mrf.mxu0
  %v876 = vadd.f32 %v469, %v875
  %877 = vmatmul.bf16.gmra.mxu0 %v334
  %v878 = vpop.f32.mrf.mxu0
  %v879 = vadd.f32 %v469, %v878
  %v880 = vpop.f32.mrf.mxu0
  %v881 = vadd.f32 %v469, %v880
  %882 = vmatmul.bf16.gmra.mxu0 %v341
  %v883 = vpop.f32.mrf.mxu0
  %v884 = vadd.f32 %v469, %v883
  %v885 = vpop.f32.mrf.mxu0
  %v886 = vadd.f32 %v469, %v885
  %887 = vmatmul.bf16.gmra.mxu0 %v348
  %v888 = vpop.f32.mrf.mxu0
  %v889 = vadd.f32 %v469, %v888
  %v890 = vpop.f32.mrf.mxu0
  %v891 = vadd.f32 %v469, %v890
  %892 = vmatmul.bf16.gmra.mxu0 %v355
  %v893 = vpop.f32.mrf.mxu0
  %v894 = vadd.f32 %v469, %v893
  %v895 = vpop.f32.mrf.mxu0
  %v896 = vadd.f32 %v469, %v895
  %897 = vmatmul.bf16.gmra.mxu0 %v362
  %v898 = vpop.f32.mrf.mxu0
  %v899 = vadd.f32 %v469, %v898
  %v900 = vpop.f32.mrf.mxu0
  %v901 = vadd.f32 %v469, %v900
  %902 = vdwg.mxu0
  %903 = vmatpush.bf16.msra.mxu0 %v682
  %904 = vmatpush.bf16.msra.mxu0 %v681
  %905 = vmatpush.bf16.msra.mxu0 %v680
  %906 = vmatpush.bf16.msra.mxu0 %v679
  %907 = vmatpush.bf16.msra.mxu0 %v678
  %908 = vmatpush.bf16.msra.mxu0 %v677
  %909 = vmatpush.bf16.msra.mxu0 %v676
  %910 = vmatpush.bf16.msra.mxu0 %v675
  %911 = vmatmul.bf16.gmra.mxu0 %v258
  %v912 = vpop.f32.mrf.mxu0
  %v913 = vadd.f32 %v824, %v912
  %v914 = vpop.f32.mrf.mxu0
  %v915 = vadd.f32 %v826, %v914
  %916 = vmatmul.bf16.gmra.mxu0 %v265
  %v917 = vpop.f32.mrf.mxu0
  %v918 = vadd.f32 %v829, %v917
  %v919 = vpop.f32.mrf.mxu0
  %v920 = vadd.f32 %v831, %v919
  %921 = vmatmul.bf16.gmra.mxu0 %v272
  %v922 = vpop.f32.mrf.mxu0
  %v923 = vadd.f32 %v834, %v922
  %v924 = vpop.f32.mrf.mxu0
  %v925 = vadd.f32 %v836, %v924
  %926 = vmatmul.bf16.gmra.mxu0 %v279
  %v927 = vpop.f32.mrf.mxu0
  %v928 = vadd.f32 %v839, %v927
  %v929 = vpop.f32.mrf.mxu0
  %v930 = vadd.f32 %v841, %v929
  %931 = vmatmul.bf16.gmra.mxu0 %v286
  %v932 = vpop.f32.mrf.mxu0
  %v933 = vadd.f32 %v844, %v932
  %v934 = vpop.f32.mrf.mxu0
  %v935 = vadd.f32 %v846, %v934
  %936 = vmatmul.bf16.gmra.mxu0 %v293
  %v937 = vpop.f32.mrf.mxu0
  %v938 = vadd.f32 %v849, %v937
  %v939 = vpop.f32.mrf.mxu0
  %v940 = vadd.f32 %v851, %v939
  %941 = vmatmul.bf16.gmra.mxu0 %v300
  %v942 = vpop.f32.mrf.mxu0
  %v943 = vadd.f32 %v854, %v942
  %v944 = vpop.f32.mrf.mxu0
  %v945 = vadd.f32 %v856, %v944
  %946 = vmatmul.bf16.gmra.mxu0 %v307
  %v947 = vpop.f32.mrf.mxu0
  %v948 = vadd.f32 %v859, %v947
  %v949 = vpop.f32.mrf.mxu0
  %v950 = vadd.f32 %v861, %v949
  %951 = vmatmul.bf16.gmra.mxu0 %v314
  %v952 = vpop.f32.mrf.mxu0
  %v953 = vadd.f32 %v864, %v952
  %v954 = vpop.f32.mrf.mxu0
  %v955 = vadd.f32 %v866, %v954
  %956 = vmatmul.bf16.gmra.mxu0 %v321
  %v957 = vpop.f32.mrf.mxu0
  %v958 = vadd.f32 %v869, %v957
  %v959 = vpop.f32.mrf.mxu0
  %v960 = vadd.f32 %v871, %v959
  %961 = vmatmul.bf16.gmra.mxu0 %v328
  %v962 = vpop.f32.mrf.mxu0
  %v963 = vadd.f32 %v874, %v962
  %v964 = vpop.f32.mrf.mxu0
  %v965 = vadd.f32 %v876, %v964
  %966 = vmatmul.bf16.gmra.mxu0 %v335
  %v967 = vpop.f32.mrf.mxu0
  %v968 = vadd.f32 %v879, %v967
  %v969 = vpop.f32.mrf.mxu0
  %v970 = vadd.f32 %v881, %v969
  %971 = vmatmul.bf16.gmra.mxu0 %v342
  %v972 = vpop.f32.mrf.mxu0
  %v973 = vadd.f32 %v884, %v972
  %v974 = vpop.f32.mrf.mxu0
  %v975 = vadd.f32 %v886, %v974
  %976 = vmatmul.bf16.gmra.mxu0 %v349
  %v977 = vpop.f32.mrf.mxu0
  %v978 = vadd.f32 %v889, %v977
  %v979 = vpop.f32.mrf.mxu0
  %v980 = vadd.f32 %v891, %v979
  %981 = vmatmul.bf16.gmra.mxu0 %v356
  %v982 = vpop.f32.mrf.mxu0
  %v983 = vadd.f32 %v894, %v982
  %v984 = vpop.f32.mrf.mxu0
  %v985 = vadd.f32 %v896, %v984
  %986 = vmatmul.bf16.gmra.mxu0 %v363
  %v987 = vpop.f32.mrf.mxu0
  %v988 = vadd.f32 %v899, %v987
  %v989 = vpop.f32.mrf.mxu0
  %v990 = vadd.f32 %v901, %v989
  %991 = vdwg.mxu0
  %992 = vmatpush.bf16.msra.mxu0 %v690
  %993 = vmatpush.bf16.msra.mxu0 %v689
  %994 = vmatpush.bf16.msra.mxu0 %v688
  %995 = vmatpush.bf16.msra.mxu0 %v687
  %996 = vmatpush.bf16.msra.mxu0 %v686
  %997 = vmatpush.bf16.msra.mxu0 %v685
  %998 = vmatpush.bf16.msra.mxu0 %v684
  %999 = vmatpush.bf16.msra.mxu0 %v683
  %1000 = vmatmul.bf16.gmra.mxu0 %v259
  %v1001 = vpop.f32.mrf.mxu0
  %v1002 = vadd.f32 %v913, %v1001
  %v1003 = vpop.f32.mrf.mxu0
  %v1004 = vadd.f32 %v915, %v1003
  %1005 = vmatmul.bf16.gmra.mxu0 %v266
  %v1006 = vpop.f32.mrf.mxu0
  %v1007 = vadd.f32 %v918, %v1006
  %v1008 = vpop.f32.mrf.mxu0
  %v1009 = vadd.f32 %v920, %v1008
  %1010 = vmatmul.bf16.gmra.mxu0 %v273
  %v1011 = vpop.f32.mrf.mxu0
  %v1012 = vadd.f32 %v923, %v1011
  %v1013 = vpop.f32.mrf.mxu0
  %v1014 = vadd.f32 %v925, %v1013
  %1015 = vmatmul.bf16.gmra.mxu0 %v280
  %v1016 = vpop.f32.mrf.mxu0
  %v1017 = vadd.f32 %v928, %v1016
  %v1018 = vpop.f32.mrf.mxu0
  %v1019 = vadd.f32 %v930, %v1018
  %1020 = vmatmul.bf16.gmra.mxu0 %v287
  %v1021 = vpop.f32.mrf.mxu0
  %v1022 = vadd.f32 %v933, %v1021
  %v1023 = vpop.f32.mrf.mxu0
  %v1024 = vadd.f32 %v935, %v1023
  %1025 = vmatmul.bf16.gmra.mxu0 %v294
  %v1026 = vpop.f32.mrf.mxu0
  %v1027 = vadd.f32 %v938, %v1026
  %v1028 = vpop.f32.mrf.mxu0
  %v1029 = vadd.f32 %v940, %v1028
  %1030 = vmatmul.bf16.gmra.mxu0 %v301
  %v1031 = vpop.f32.mrf.mxu0
  %v1032 = vadd.f32 %v943, %v1031
  %v1033 = vpop.f32.mrf.mxu0
  %v1034 = vadd.f32 %v945, %v1033
  %1035 = vmatmul.bf16.gmra.mxu0 %v308
  %v1036 = vpop.f32.mrf.mxu0
  %v1037 = vadd.f32 %v948, %v1036
  %v1038 = vpop.f32.mrf.mxu0
  %v1039 = vadd.f32 %v950, %v1038
  %1040 = vmatmul.bf16.gmra.mxu0 %v315
  %v1041 = vpop.f32.mrf.mxu0
  %v1042 = vadd.f32 %v953, %v1041
  %v1043 = vpop.f32.mrf.mxu0
  %v1044 = vadd.f32 %v955, %v1043
  %1045 = vmatmul.bf16.gmra.mxu0 %v322
  %v1046 = vpop.f32.mrf.mxu0
  %v1047 = vadd.f32 %v958, %v1046
  %v1048 = vpop.f32.mrf.mxu0
  %v1049 = vadd.f32 %v960, %v1048
  %1050 = vmatmul.bf16.gmra.mxu0 %v329
  %v1051 = vpop.f32.mrf.mxu0
  %v1052 = vadd.f32 %v963, %v1051
  %v1053 = vpop.f32.mrf.mxu0
  %v1054 = vadd.f32 %v965, %v1053
  %1055 = vmatmul.bf16.gmra.mxu0 %v336
  %v1056 = vpop.f32.mrf.mxu0
  %v1057 = vadd.f32 %v968, %v1056
  %v1058 = vpop.f32.mrf.mxu0
  %v1059 = vadd.f32 %v970, %v1058
  %1060 = vmatmul.bf16.gmra.mxu0 %v343
  %v1061 = vpop.f32.mrf.mxu0
  %v1062 = vadd.f32 %v973, %v1061
  %v1063 = vpop.f32.mrf.mxu0
  %v1064 = vadd.f32 %v975, %v1063
  %1065 = vmatmul.bf16.gmra.mxu0 %v350
  %v1066 = vpop.f32.mrf.mxu0
  %v1067 = vadd.f32 %v978, %v1066
  %v1068 = vpop.f32.mrf.mxu0
  %v1069 = vadd.f32 %v980, %v1068
  %1070 = vmatmul.bf16.gmra.mxu0 %v357
  %v1071 = vpop.f32.mrf.mxu0
  %v1072 = vadd.f32 %v983, %v1071
  %v1073 = vpop.f32.mrf.mxu0
  %v1074 = vadd.f32 %v985, %v1073
  %1075 = vmatmul.bf16.gmra.mxu0 %v364
  %v1076 = vpop.f32.mrf.mxu0
  %v1077 = vadd.f32 %v988, %v1076
  %v1078 = vpop.f32.mrf.mxu0
  %v1079 = vadd.f32 %v990, %v1078
  %1080 = vdwg.mxu0
  %1081 = vmatpush.bf16.msra.mxu0 %v698
  %1082 = vmatpush.bf16.msra.mxu0 %v697
  %1083 = vmatpush.bf16.msra.mxu0 %v696
  %1084 = vmatpush.bf16.msra.mxu0 %v695
  %1085 = vmatpush.bf16.msra.mxu0 %v694
  %1086 = vmatpush.bf16.msra.mxu0 %v693
  %1087 = vmatpush.bf16.msra.mxu0 %v692
  %1088 = vmatpush.bf16.msra.mxu0 %v691
  %1089 = vmatmul.bf16.gmra.mxu0 %v260
  %v1090 = vpop.f32.mrf.mxu0
  %v1091 = vadd.f32 %v1002, %v1090
  %v1092 = vpop.f32.mrf.mxu0
  %v1093 = vadd.f32 %v1004, %v1092
  %1094 = vmatmul.bf16.gmra.mxu0 %v267
  %v1095 = vpop.f32.mrf.mxu0
  %v1096 = vadd.f32 %v1007, %v1095
  %v1097 = vpop.f32.mrf.mxu0
  %v1098 = vadd.f32 %v1009, %v1097
  %1099 = vmatmul.bf16.gmra.mxu0 %v274
  %v1100 = vpop.f32.mrf.mxu0
  %v1101 = vadd.f32 %v1012, %v1100
  %v1102 = vpop.f32.mrf.mxu0
  %v1103 = vadd.f32 %v1014, %v1102
  %1104 = vmatmul.bf16.gmra.mxu0 %v281
  %v1105 = vpop.f32.mrf.mxu0
  %v1106 = vadd.f32 %v1017, %v1105
  %v1107 = vpop.f32.mrf.mxu0
  %v1108 = vadd.f32 %v1019, %v1107
  %1109 = vmatmul.bf16.gmra.mxu0 %v288
  %v1110 = vpop.f32.mrf.mxu0
  %v1111 = vadd.f32 %v1022, %v1110
  %v1112 = vpop.f32.mrf.mxu0
  %v1113 = vadd.f32 %v1024, %v1112
  %1114 = vmatmul.bf16.gmra.mxu0 %v295
  %v1115 = vpop.f32.mrf.mxu0
  %v1116 = vadd.f32 %v1027, %v1115
  %v1117 = vpop.f32.mrf.mxu0
  %v1118 = vadd.f32 %v1029, %v1117
  %1119 = vmatmul.bf16.gmra.mxu0 %v302
  %v1120 = vpop.f32.mrf.mxu0
  %v1121 = vadd.f32 %v1032, %v1120
  %v1122 = vpop.f32.mrf.mxu0
  %v1123 = vadd.f32 %v1034, %v1122
  %1124 = vmatmul.bf16.gmra.mxu0 %v309
  %v1125 = vpop.f32.mrf.mxu0
  %v1126 = vadd.f32 %v1037, %v1125
  %v1127 = vpop.f32.mrf.mxu0
  %v1128 = vadd.f32 %v1039, %v1127
  %1129 = vmatmul.bf16.gmra.mxu0 %v316
  %v1130 = vpop.f32.mrf.mxu0
  %v1131 = vadd.f32 %v1042, %v1130
  %v1132 = vpop.f32.mrf.mxu0
  %v1133 = vadd.f32 %v1044, %v1132
  %1134 = vmatmul.bf16.gmra.mxu0 %v323
  %v1135 = vpop.f32.mrf.mxu0
  %v1136 = vadd.f32 %v1047, %v1135
  %v1137 = vpop.f32.mrf.mxu0
  %v1138 = vadd.f32 %v1049, %v1137
  %1139 = vmatmul.bf16.gmra.mxu0 %v330
  %v1140 = vpop.f32.mrf.mxu0
  %v1141 = vadd.f32 %v1052, %v1140
  %v1142 = vpop.f32.mrf.mxu0
  %v1143 = vadd.f32 %v1054, %v1142
  %1144 = vmatmul.bf16.gmra.mxu0 %v337
  %v1145 = vpop.f32.mrf.mxu0
  %v1146 = vadd.f32 %v1057, %v1145
  %v1147 = vpop.f32.mrf.mxu0
  %v1148 = vadd.f32 %v1059, %v1147
  %1149 = vmatmul.bf16.gmra.mxu0 %v344
  %v1150 = vpop.f32.mrf.mxu0
  %v1151 = vadd.f32 %v1062, %v1150
  %v1152 = vpop.f32.mrf.mxu0
  %v1153 = vadd.f32 %v1064, %v1152
  %1154 = vmatmul.bf16.gmra.mxu0 %v351
  %v1155 = vpop.f32.mrf.mxu0
  %v1156 = vadd.f32 %v1067, %v1155
  %v1157 = vpop.f32.mrf.mxu0
  %v1158 = vadd.f32 %v1069, %v1157
  %1159 = vmatmul.bf16.gmra.mxu0 %v358
  %v1160 = vpop.f32.mrf.mxu0
  %v1161 = vadd.f32 %v1072, %v1160
  %v1162 = vpop.f32.mrf.mxu0
  %v1163 = vadd.f32 %v1074, %v1162
  %1164 = vmatmul.bf16.gmra.mxu0 %v365
  %v1165 = vpop.f32.mrf.mxu0
  %v1166 = vadd.f32 %v1077, %v1165
  %v1167 = vpop.f32.mrf.mxu0
  %v1168 = vadd.f32 %v1079, %v1167
  %1169 = vdwg.mxu0
  %1170 = vmatpush.bf16.msra.mxu0 %v706
  %1171 = vmatpush.bf16.msra.mxu0 %v705
  %1172 = vmatpush.bf16.msra.mxu0 %v704
  %1173 = vmatpush.bf16.msra.mxu0 %v703
  %1174 = vmatpush.bf16.msra.mxu0 %v702
  %1175 = vmatpush.bf16.msra.mxu0 %v701
  %1176 = vmatpush.bf16.msra.mxu0 %v700
  %1177 = vmatpush.bf16.msra.mxu0 %v699
  %1178 = vmatmul.bf16.gmra.mxu0 %v261
  %v1179 = vpop.f32.mrf.mxu0
  %v1180 = vadd.f32 %v1091, %v1179
  %v1181 = vpop.f32.mrf.mxu0
  %v1182 = vadd.f32 %v1093, %v1181
  %1183 = vmatmul.bf16.gmra.mxu0 %v268
  %v1184 = vpop.f32.mrf.mxu0
  %v1185 = vadd.f32 %v1096, %v1184
  %v1186 = vpop.f32.mrf.mxu0
  %v1187 = vadd.f32 %v1098, %v1186
  %1188 = vmatmul.bf16.gmra.mxu0 %v275
  %v1189 = vpop.f32.mrf.mxu0
  %v1190 = vadd.f32 %v1101, %v1189
  %v1191 = vpop.f32.mrf.mxu0
  %v1192 = vadd.f32 %v1103, %v1191
  %1193 = vmatmul.bf16.gmra.mxu0 %v282
  %v1194 = vpop.f32.mrf.mxu0
  %v1195 = vadd.f32 %v1106, %v1194
  %v1196 = vpop.f32.mrf.mxu0
  %v1197 = vadd.f32 %v1108, %v1196
  %1198 = vmatmul.bf16.gmra.mxu0 %v289
  %v1199 = vpop.f32.mrf.mxu0
  %v1200 = vadd.f32 %v1111, %v1199
  %v1201 = vpop.f32.mrf.mxu0
  %v1202 = vadd.f32 %v1113, %v1201
  %1203 = vmatmul.bf16.gmra.mxu0 %v296
  %v1204 = vpop.f32.mrf.mxu0
  %v1205 = vadd.f32 %v1116, %v1204
  %v1206 = vpop.f32.mrf.mxu0
  %v1207 = vadd.f32 %v1118, %v1206
  %1208 = vmatmul.bf16.gmra.mxu0 %v303
  %v1209 = vpop.f32.mrf.mxu0
  %v1210 = vadd.f32 %v1121, %v1209
  %v1211 = vpop.f32.mrf.mxu0
  %v1212 = vadd.f32 %v1123, %v1211
  %1213 = vmatmul.bf16.gmra.mxu0 %v310
  %v1214 = vpop.f32.mrf.mxu0
  %v1215 = vadd.f32 %v1126, %v1214
  %v1216 = vpop.f32.mrf.mxu0
  %v1217 = vadd.f32 %v1128, %v1216
  %1218 = vmatmul.bf16.gmra.mxu0 %v317
  %v1219 = vpop.f32.mrf.mxu0
  %v1220 = vadd.f32 %v1131, %v1219
  %v1221 = vpop.f32.mrf.mxu0
  %v1222 = vadd.f32 %v1133, %v1221
  %1223 = vmatmul.bf16.gmra.mxu0 %v324
  %v1224 = vpop.f32.mrf.mxu0
  %v1225 = vadd.f32 %v1136, %v1224
  %v1226 = vpop.f32.mrf.mxu0
  %v1227 = vadd.f32 %v1138, %v1226
  %1228 = vmatmul.bf16.gmra.mxu0 %v331
  %v1229 = vpop.f32.mrf.mxu0
  %v1230 = vadd.f32 %v1141, %v1229
  %v1231 = vpop.f32.mrf.mxu0
  %v1232 = vadd.f32 %v1143, %v1231
  %1233 = vmatmul.bf16.gmra.mxu0 %v338
  %v1234 = vpop.f32.mrf.mxu0
  %v1235 = vadd.f32 %v1146, %v1234
  %v1236 = vpop.f32.mrf.mxu0
  %v1237 = vadd.f32 %v1148, %v1236
  %1238 = vmatmul.bf16.gmra.mxu0 %v345
  %v1239 = vpop.f32.mrf.mxu0
  %v1240 = vadd.f32 %v1151, %v1239
  %v1241 = vpop.f32.mrf.mxu0
  %v1242 = vadd.f32 %v1153, %v1241
  %1243 = vmatmul.bf16.gmra.mxu0 %v352
  %v1244 = vpop.f32.mrf.mxu0
  %v1245 = vadd.f32 %v1156, %v1244
  %v1246 = vpop.f32.mrf.mxu0
  %v1247 = vadd.f32 %v1158, %v1246
  %1248 = vmatmul.bf16.gmra.mxu0 %v359
  %v1249 = vpop.f32.mrf.mxu0
  %v1250 = vadd.f32 %v1161, %v1249
  %v1251 = vpop.f32.mrf.mxu0
  %v1252 = vadd.f32 %v1163, %v1251
  %1253 = vmatmul.bf16.gmra.mxu0 %v366
  %v1254 = vpop.f32.mrf.mxu0
  %v1255 = vadd.f32 %v1166, %v1254
  %v1256 = vpop.f32.mrf.mxu0
  %v1257 = vadd.f32 %v1168, %v1256
  %1258 = vdwg.mxu0
  %1259 = vmatpush.bf16.msra.mxu0 %v714
  %1260 = vmatpush.bf16.msra.mxu0 %v713
  %1261 = vmatpush.bf16.msra.mxu0 %v712
  %1262 = vmatpush.bf16.msra.mxu0 %v711
  %1263 = vmatpush.bf16.msra.mxu0 %v710
  %1264 = vmatpush.bf16.msra.mxu0 %v709
  %1265 = vmatpush.bf16.msra.mxu0 %v708
  %1266 = vmatpush.bf16.msra.mxu0 %v707
  %1267 = vmatmul.bf16.gmra.mxu0 %v262
  %v1268 = vpop.f32.mrf.mxu0
  %v1269 = vadd.f32 %v1180, %v1268
  %v1270 = vpop.f32.mrf.mxu0
  %v1271 = vadd.f32 %v1182, %v1270
  %1272 = vmatmul.bf16.gmra.mxu0 %v269
  %v1273 = vpop.f32.mrf.mxu0
  %v1274 = vadd.f32 %v1185, %v1273
  %v1275 = vpop.f32.mrf.mxu0
  %v1276 = vadd.f32 %v1187, %v1275
  %1277 = vmatmul.bf16.gmra.mxu0 %v276
  %v1278 = vpop.f32.mrf.mxu0
  %v1279 = vadd.f32 %v1190, %v1278
  %v1280 = vpop.f32.mrf.mxu0
  %v1281 = vadd.f32 %v1192, %v1280
  %1282 = vmatmul.bf16.gmra.mxu0 %v283
  %v1283 = vpop.f32.mrf.mxu0
  %v1284 = vadd.f32 %v1195, %v1283
  %v1285 = vpop.f32.mrf.mxu0
  %v1286 = vadd.f32 %v1197, %v1285
  %1287 = vmatmul.bf16.gmra.mxu0 %v290
  %v1288 = vpop.f32.mrf.mxu0
  %v1289 = vadd.f32 %v1200, %v1288
  %v1290 = vpop.f32.mrf.mxu0
  %v1291 = vadd.f32 %v1202, %v1290
  %1292 = vmatmul.bf16.gmra.mxu0 %v297
  %v1293 = vpop.f32.mrf.mxu0
  %v1294 = vadd.f32 %v1205, %v1293
  %v1295 = vpop.f32.mrf.mxu0
  %v1296 = vadd.f32 %v1207, %v1295
  %1297 = vmatmul.bf16.gmra.mxu0 %v304
  %v1298 = vpop.f32.mrf.mxu0
  %v1299 = vadd.f32 %v1210, %v1298
  %v1300 = vpop.f32.mrf.mxu0
  %v1301 = vadd.f32 %v1212, %v1300
  %1302 = vmatmul.bf16.gmra.mxu0 %v311
  %v1303 = vpop.f32.mrf.mxu0
  %v1304 = vadd.f32 %v1215, %v1303
  %v1305 = vpop.f32.mrf.mxu0
  %v1306 = vadd.f32 %v1217, %v1305
  %1307 = vmatmul.bf16.gmra.mxu0 %v318
  %v1308 = vpop.f32.mrf.mxu0
  %v1309 = vadd.f32 %v1220, %v1308
  %v1310 = vpop.f32.mrf.mxu0
  %v1311 = vadd.f32 %v1222, %v1310
  %1312 = vmatmul.bf16.gmra.mxu0 %v325
  %v1313 = vpop.f32.mrf.mxu0
  %v1314 = vadd.f32 %v1225, %v1313
  %v1315 = vpop.f32.mrf.mxu0
  %v1316 = vadd.f32 %v1227, %v1315
  %1317 = vmatmul.bf16.gmra.mxu0 %v332
  %v1318 = vpop.f32.mrf.mxu0
  %v1319 = vadd.f32 %v1230, %v1318
  %v1320 = vpop.f32.mrf.mxu0
  %v1321 = vadd.f32 %v1232, %v1320
  %1322 = vmatmul.bf16.gmra.mxu0 %v339
  %v1323 = vpop.f32.mrf.mxu0
  %v1324 = vadd.f32 %v1235, %v1323
  %v1325 = vpop.f32.mrf.mxu0
  %v1326 = vadd.f32 %v1237, %v1325
  %1327 = vmatmul.bf16.gmra.mxu0 %v346
  %v1328 = vpop.f32.mrf.mxu0
  %v1329 = vadd.f32 %v1240, %v1328
  %v1330 = vpop.f32.mrf.mxu0
  %v1331 = vadd.f32 %v1242, %v1330
  %1332 = vmatmul.bf16.gmra.mxu0 %v353
  %v1333 = vpop.f32.mrf.mxu0
  %v1334 = vadd.f32 %v1245, %v1333
  %v1335 = vpop.f32.mrf.mxu0
  %v1336 = vadd.f32 %v1247, %v1335
  %1337 = vmatmul.bf16.gmra.mxu0 %v360
  %v1338 = vpop.f32.mrf.mxu0
  %v1339 = vadd.f32 %v1250, %v1338
  %v1340 = vpop.f32.mrf.mxu0
  %v1341 = vadd.f32 %v1252, %v1340
  %1342 = vmatmul.bf16.gmra.mxu0 %v367
  %v1343 = vpop.f32.mrf.mxu0
  %v1344 = vadd.f32 %v1255, %v1343
  %v1345 = vpop.f32.mrf.mxu0
  %v1346 = vadd.f32 %v1257, %v1345
  %1347 = vdwg.mxu0
  %1348 = vmatpush.bf16.msra.mxu0 0
  %1349 = vmatpush.bf16.msra.mxu0 0
  %1350 = vmatpush.bf16.msra.mxu0 0
  %1351 = vmatpush.bf16.msra.mxu0 0
  %1352 = vmatpush.bf16.msra.mxu0 0
  %1353 = vmatpush.bf16.msra.mxu0 0
  %1354 = vmatpush.bf16.msra.mxu0 0
  %1355 = vmatpush.bf16.msra.mxu0 %v715
  %1356 = vmatmul.bf16.gmra.mxu0 %v767
  %v1357 = vpop.f32.mrf.mxu0
  %v1358 = vadd.f32 %v1269, %v1357
  %v1359 = vpop.f32.mrf.mxu0
  %v1360 = vadd.f32 %v1271, %v1359
  %1361 = vmatmul.bf16.gmra.mxu0 %v770
  %v1362 = vpop.f32.mrf.mxu0
  %v1363 = vadd.f32 %v1274, %v1362
  %v1364 = vpop.f32.mrf.mxu0
  %v1365 = vadd.f32 %v1276, %v1364
  %1366 = vmatmul.bf16.gmra.mxu0 %v773
  %v1367 = vpop.f32.mrf.mxu0
  %v1368 = vadd.f32 %v1279, %v1367
  %v1369 = vpop.f32.mrf.mxu0
  %v1370 = vadd.f32 %v1281, %v1369
  %1371 = vmatmul.bf16.gmra.mxu0 %v776
  %v1372 = vpop.f32.mrf.mxu0
  %v1373 = vadd.f32 %v1284, %v1372
  %v1374 = vpop.f32.mrf.mxu0
  %v1375 = vadd.f32 %v1286, %v1374
  %1376 = vmatmul.bf16.gmra.mxu0 %v779
  %v1377 = vpop.f32.mrf.mxu0
  %v1378 = vadd.f32 %v1289, %v1377
  %v1379 = vpop.f32.mrf.mxu0
  %v1380 = vadd.f32 %v1291, %v1379
  %1381 = vmatmul.bf16.gmra.mxu0 %v782
  %v1382 = vpop.f32.mrf.mxu0
  %v1383 = vadd.f32 %v1294, %v1382
  %v1384 = vpop.f32.mrf.mxu0
  %v1385 = vadd.f32 %v1296, %v1384
  %1386 = vmatmul.bf16.gmra.mxu0 %v785
  %v1387 = vpop.f32.mrf.mxu0
  %v1388 = vadd.f32 %v1299, %v1387
  %v1389 = vpop.f32.mrf.mxu0
  %v1390 = vadd.f32 %v1301, %v1389
  %1391 = vmatmul.bf16.gmra.mxu0 %v788
  %v1392 = vpop.f32.mrf.mxu0
  %v1393 = vadd.f32 %v1304, %v1392
  %v1394 = vpop.f32.mrf.mxu0
  %v1395 = vadd.f32 %v1306, %v1394
  %1396 = vmatmul.bf16.gmra.mxu0 %v791
  %v1397 = vpop.f32.mrf.mxu0
  %v1398 = vadd.f32 %v1309, %v1397
  %v1399 = vpop.f32.mrf.mxu0
  %v1400 = vadd.f32 %v1311, %v1399
  %1401 = vmatmul.bf16.gmra.mxu0 %v794
  %v1402 = vpop.f32.mrf.mxu0
  %v1403 = vadd.f32 %v1314, %v1402
  %v1404 = vpop.f32.mrf.mxu0
  %v1405 = vadd.f32 %v1316, %v1404
  %1406 = vmatmul.bf16.gmra.mxu0 %v797
  %v1407 = vpop.f32.mrf.mxu0
  %v1408 = vadd.f32 %v1319, %v1407
  %v1409 = vpop.f32.mrf.mxu0
  %v1410 = vadd.f32 %v1321, %v1409
  %1411 = vmatmul.bf16.gmra.mxu0 %v800
  %v1412 = vpop.f32.mrf.mxu0
  %v1413 = vadd.f32 %v1324, %v1412
  %v1414 = vpop.f32.mrf.mxu0
  %v1415 = vadd.f32 %v1326, %v1414
  %1416 = vmatmul.bf16.gmra.mxu0 %v803
  %v1417 = vpop.f32.mrf.mxu0
  %v1418 = vadd.f32 %v1329, %v1417
  %v1419 = vpop.f32.mrf.mxu0
  %v1420 = vadd.f32 %v1331, %v1419
  %1421 = vmatmul.bf16.gmra.mxu0 %v806
  %v1422 = vpop.f32.mrf.mxu0
  %v1423 = vadd.f32 %v1334, %v1422
  %v1424 = vpop.f32.mrf.mxu0
  %v1425 = vadd.f32 %v1336, %v1424
  %1426 = vmatmul.bf16.gmra.mxu0 %v809
  %v1427 = vpop.f32.mrf.mxu0
  %v1428 = vadd.f32 %v1339, %v1427
  %v1429 = vpop.f32.mrf.mxu0
  %v1430 = vadd.f32 %v1341, %v1429
  %1431 = vmatmul.bf16.gmra.mxu0 %v812
  %v1432 = vpop.f32.mrf.mxu0
  %v1433 = vadd.f32 %v1344, %v1432
  %v1434 = vpop.f32.mrf.mxu0
  %v1435 = vadd.f32 %v1346, %v1434
  %1436 = vdwg.mxu0
  %v1437 = vmax.f32 %v1358, 0.0
  %v1438 = vmax.f32 %v1360, 0.0
  %v1439 = vmax.f32 %v1363, 0.0
  %v1440 = vmax.f32 %v1365, 0.0
  %v1441 = vmax.f32 %v1368, 0.0
  %v1442 = vmax.f32 %v1370, 0.0
  %v1443 = vmax.f32 %v1373, 0.0
  %v1444 = vmax.f32 %v1375, 0.0
  %v1445 = vmax.f32 %v1378, 0.0
  %v1446 = vmax.f32 %v1380, 0.0
  %v1447 = vmax.f32 %v1383, 0.0
  %v1448 = vmax.f32 %v1385, 0.0
  %v1449 = vmax.f32 %v1388, 0.0
  %v1450 = vmax.f32 %v1390, 0.0
  %v1451 = vmax.f32 %v1393, 0.0
  %v1452 = vmax.f32 %v1395, 0.0
  %v1453 = vmax.f32 %v1398, 0.0
  %v1454 = vmax.f32 %v1400, 0.0
  %v1455 = vmax.f32 %v1403, 0.0
  %v1456 = vmax.f32 %v1405, 0.0
  %v1457 = vmax.f32 %v1408, 0.0
  %v1458 = vmax.f32 %v1410, 0.0
  %v1459 = vmax.f32 %v1413, 0.0
  %v1460 = vmax.f32 %v1415, 0.0
  %v1461 = vmax.f32 %v1418, 0.0
  %v1462 = vmax.f32 %v1420, 0.0
  %v1463 = vmax.f32 %v1423, 0.0
  %v1464 = vmax.f32 %v1425, 0.0
  %v1465 = vmax.f32 %v1428, 0.0
  %v1466 = vmax.f32 %v1430, 0.0
  %v1467 = vmax.f32 %v1433, 0.0
  %v1468 = vmax.f32 %v1435, 0.0
  %v1469 = vpack.c.bf16 %v1438, %v1437
  %v1470 = vpack.c.bf16 %v1440, %v1439
  %v1471 = vpack.c.bf16 %v1442, %v1441
  %v1472 = vpack.c.bf16 %v1444, %v1443
  %v1473 = vpack.c.bf16 %v1446, %v1445
  %v1474 = vpack.c.bf16 %v1448, %v1447
  %v1475 = vpack.c.bf16 %v1450, %v1449
  %v1476 = vpack.c.bf16 %v1452, %v1451
  %v1477 = vpack.c.bf16 %v1454, %v1453
  %v1478 = vpack.c.bf16 %v1456, %v1455
  %v1479 = vpack.c.bf16 %v1458, %v1457
  %v1480 = vpack.c.bf16 %v1460, %v1459
  %v1481 = vpack.c.bf16 %v1462, %v1461
  %v1482 = vpack.c.bf16 %v1464, %v1463
  %v1483 = vpack.c.bf16 %v1466, %v1465
  %v1484 = vpack.c.bf16 %v1468, %v1467
  %v1485 = vld [vmem:[%s3] sm:$0xf]
  %v1486 = vld [vmem:[%s3 + $0x4] sm:$0xf]
  %v1487 = vld [vmem:[%s3 + $0x8] sm:$0xf]
  %v1488 = vld [vmem:[%s3 + $0xc] sm:$0xf]
  %v1489 = vld [vmem:[%s3 + $0x10] sm:$0xf]
  %v1490 = vld [vmem:[%s3 + $0x14] sm:$0xf]
  %v1491 = vld [vmem:[%s3 + $0x18] sm:$0xf]
  %v1492 = vld [vmem:[%s3 + $0x1c] sm:$0xf]
  %v1493 = vld [vmem:[%s3 + $0x20] sm:$0xf]
  %v1494 = vld [vmem:[%s3 + $0x24] sm:$0xf]
  %v1495 = vld [vmem:[%s3 + $0x28] sm:$0xf]
  %v1496 = vld [vmem:[%s3 + $0x2c] sm:$0xf]
  %v1497 = vld [vmem:[%s3 + $0x30] sm:$0xf]
  %v1498 = vld [vmem:[%s3 + $0x34] sm:$0xf]
  %v1499 = vld [vmem:[%s3 + $0x38] sm:$0xf]
  %v1500 = vld [vmem:[%s3 + $0x3c] sm:$0xf]
  %v1501 = vld [vmem:[%s4] sm:$0x1]
  %v1503 = vperm.slane %v1501, 0
  %v1521 = vunpack.c.l.b16 %v1485
  %v1522 = vunpack.c.l.b16 %v1486
  %v1523 = vunpack.c.l.b16 %v1487
  %v1524 = vunpack.c.l.b16 %v1488
  %v1525 = vunpack.c.l.b16 %v1489
  %v1526 = vunpack.c.l.b16 %v1490
  %v1527 = vunpack.c.l.b16 %v1491
  %v1528 = vunpack.c.l.b16 %v1492
  %v1529 = vunpack.c.l.b16 %v1493
  %v1530 = vunpack.c.l.b16 %v1494
  %v1531 = vunpack.c.l.b16 %v1495
  %v1532 = vunpack.c.l.b16 %v1496
  %v1533 = vunpack.c.l.b16 %v1497
  %v1534 = vunpack.c.l.b16 %v1498
  %v1535 = vunpack.c.l.b16 %v1499
  %v1536 = vunpack.c.l.b16 %v1500
  %v1537 = vpack.c.b16 %v1522, %v1521
  %v1538 = vpack.c.b16 %v1524, %v1523
  %v1539 = vpack.c.b16 %v1526, %v1525
  %v1540 = vpack.c.b16 %v1528, %v1527
  %v1541 = vpack.c.b16 %v1530, %v1529
  %v1542 = vpack.c.b16 %v1532, %v1531
  %v1543 = vpack.c.b16 %v1534, %v1533
  %v1544 = vpack.c.b16 %v1536, %v1535
  %1553 = vmatpush.bf16.msra.mxu0 %v1544
  %1554 = vmatpush.bf16.msra.mxu0 %v1543
  %1555 = vmatpush.bf16.msra.mxu0 %v1542
  %1556 = vmatpush.bf16.msra.mxu0 %v1541
  %1557 = vmatpush.bf16.msra.mxu0 %v1540
  %1558 = vmatpush.bf16.msra.mxu0 %v1539
  %1559 = vmatpush.bf16.msra.mxu0 %v1538
  %1560 = vmatpush.bf16.msra.mxu0 %v1537
  %1561 = vmatmul.bf16.gmra.mxu0 %v1469
  %v1562 = vpop.f32.mrf.mxu0
  %v1563 = vadd.f32 %v1503, %v1562
  %v1564 = vpop.f32.mrf.mxu0
  %v1565 = vadd.f32 %v1503, %v1564
  %1566 = vmatmul.bf16.gmra.mxu0 %v1470
  %v1567 = vpop.f32.mrf.mxu0
  %v1568 = vadd.f32 %v1503, %v1567
  %v1569 = vpop.f32.mrf.mxu0
  %v1570 = vadd.f32 %v1503, %v1569
  %1571 = vmatmul.bf16.gmra.mxu0 %v1471
  %v1572 = vpop.f32.mrf.mxu0
  %v1573 = vadd.f32 %v1503, %v1572
  %v1574 = vpop.f32.mrf.mxu0
  %v1575 = vadd.f32 %v1503, %v1574
  %1576 = vmatmul.bf16.gmra.mxu0 %v1472
  %v1577 = vpop.f32.mrf.mxu0
  %v1578 = vadd.f32 %v1503, %v1577
  %v1579 = vpop.f32.mrf.mxu0
  %v1580 = vadd.f32 %v1503, %v1579
  %1581 = vmatmul.bf16.gmra.mxu0 %v1473
  %v1582 = vpop.f32.mrf.mxu0
  %v1583 = vadd.f32 %v1503, %v1582
  %v1584 = vpop.f32.mrf.mxu0
  %v1585 = vadd.f32 %v1503, %v1584
  %1586 = vmatmul.bf16.gmra.mxu0 %v1474
  %v1587 = vpop.f32.mrf.mxu0
  %v1588 = vadd.f32 %v1503, %v1587
  %v1589 = vpop.f32.mrf.mxu0
  %v1590 = vadd.f32 %v1503, %v1589
  %1591 = vmatmul.bf16.gmra.mxu0 %v1475
  %v1592 = vpop.f32.mrf.mxu0
  %v1593 = vadd.f32 %v1503, %v1592
  %v1594 = vpop.f32.mrf.mxu0
  %v1595 = vadd.f32 %v1503, %v1594
  %1596 = vmatmul.bf16.gmra.mxu0 %v1476
  %v1597 = vpop.f32.mrf.mxu0
  %v1598 = vadd.f32 %v1503, %v1597
  %v1599 = vpop.f32.mrf.mxu0
  %v1600 = vadd.f32 %v1503, %v1599
  %1601 = vmatmul.bf16.gmra.mxu0 %v1477
  %v1602 = vpop.f32.mrf.mxu0
  %v1603 = vadd.f32 %v1503, %v1602
  %v1604 = vpop.f32.mrf.mxu0
  %v1605 = vadd.f32 %v1503, %v1604
  %1606 = vmatmul.bf16.gmra.mxu0 %v1478
  %v1607 = vpop.f32.mrf.mxu0
  %v1608 = vadd.f32 %v1503, %v1607
  %v1609 = vpop.f32.mrf.mxu0
  %v1610 = vadd.f32 %v1503, %v1609
  %1611 = vmatmul.bf16.gmra.mxu0 %v1479
  %v1612 = vpop.f32.mrf.mxu0
  %v1613 = vadd.f32 %v1503, %v1612
  %v1614 = vpop.f32.mrf.mxu0
  %v1615 = vadd.f32 %v1503, %v1614
  %1616 = vmatmul.bf16.gmra.mxu0 %v1480
  %v1617 = vpop.f32.mrf.mxu0
  %v1618 = vadd.f32 %v1503, %v1617
  %v1619 = vpop.f32.mrf.mxu0
  %v1620 = vadd.f32 %v1503, %v1619
  %1621 = vmatmul.bf16.gmra.mxu0 %v1481
  %v1622 = vpop.f32.mrf.mxu0
  %v1623 = vadd.f32 %v1503, %v1622
  %v1624 = vpop.f32.mrf.mxu0
  %v1625 = vadd.f32 %v1503, %v1624
  %1626 = vmatmul.bf16.gmra.mxu0 %v1482
  %v1627 = vpop.f32.mrf.mxu0
  %v1628 = vadd.f32 %v1503, %v1627
  %v1629 = vpop.f32.mrf.mxu0
  %v1630 = vadd.f32 %v1503, %v1629
  %1631 = vmatmul.bf16.gmra.mxu0 %v1483
  %v1632 = vpop.f32.mrf.mxu0
  %v1633 = vadd.f32 %v1503, %v1632
  %v1634 = vpop.f32.mrf.mxu0
  %v1635 = vadd.f32 %v1503, %v1634
  %1636 = vmatmul.bf16.gmra.mxu0 %v1484
  %v1637 = vpop.f32.mrf.mxu0
  %v1638 = vadd.f32 %v1503, %v1637
  %v1639 = vpop.f32.mrf.mxu0
  %v1640 = vadd.f32 %v1503, %v1639
  %1641 = vdwg.mxu0
  %v1642 = vmax.f32 %v1563, 0.0
  %v1643 = vmax.f32 %v1565, 0.0
  %v1644 = vmax.f32 %v1568, 0.0
  %v1645 = vmax.f32 %v1570, 0.0
  %v1646 = vmax.f32 %v1573, 0.0
  %v1647 = vmax.f32 %v1575, 0.0
  %v1648 = vmax.f32 %v1578, 0.0
  %v1649 = vmax.f32 %v1580, 0.0
  %v1650 = vmax.f32 %v1583, 0.0
  %v1651 = vmax.f32 %v1585, 0.0
  %v1652 = vmax.f32 %v1588, 0.0
  %v1653 = vmax.f32 %v1590, 0.0
  %v1654 = vmax.f32 %v1593, 0.0
  %v1655 = vmax.f32 %v1595, 0.0
  %v1656 = vmax.f32 %v1598, 0.0
  %v1657 = vmax.f32 %v1600, 0.0
  %v1658 = vmax.f32 %v1603, 0.0
  %v1659 = vmax.f32 %v1605, 0.0
  %v1660 = vmax.f32 %v1608, 0.0
  %v1661 = vmax.f32 %v1610, 0.0
  %v1662 = vmax.f32 %v1613, 0.0
  %v1663 = vmax.f32 %v1615, 0.0
  %v1664 = vmax.f32 %v1618, 0.0
  %v1665 = vmax.f32 %v1620, 0.0
  %v1666 = vmax.f32 %v1623, 0.0
  %v1667 = vmax.f32 %v1625, 0.0
  %v1668 = vmax.f32 %v1628, 0.0
  %v1669 = vmax.f32 %v1630, 0.0
  %v1670 = vmax.f32 %v1633, 0.0
  %v1671 = vmax.f32 %v1635, 0.0
  %v1672 = vmax.f32 %v1638, 0.0
  %v1673 = vmax.f32 %v1640, 0.0
  %v1674 = vpack.c.bf16 %v1643, %v1642
  %v1675 = vpack.c.bf16 %v1645, %v1644
  %v1676 = vpack.c.bf16 %v1647, %v1646
  %v1677 = vpack.c.bf16 %v1649, %v1648
  %v1678 = vpack.c.bf16 %v1651, %v1650
  %v1679 = vpack.c.bf16 %v1653, %v1652
  %v1680 = vpack.c.bf16 %v1655, %v1654
  %v1681 = vpack.c.bf16 %v1657, %v1656
  %v1682 = vpack.c.bf16 %v1659, %v1658
  %v1683 = vpack.c.bf16 %v1661, %v1660
  %v1684 = vpack.c.bf16 %v1663, %v1662
  %v1685 = vpack.c.bf16 %v1665, %v1664
  %v1686 = vpack.c.bf16 %v1667, %v1666
  %v1687 = vpack.c.bf16 %v1669, %v1668
  %v1688 = vpack.c.bf16 %v1671, %v1670
  %v1689 = vpack.c.bf16 %v1673, %v1672
  %v1690 = vld [vmem:[%s5] sm:$0xf]
  %v1691 = vld [vmem:[%s5 + $0x4] sm:$0xf]
  %v1692 = vld [vmem:[%s5 + $0x8] sm:$0xf]
  %v1693 = vld [vmem:[%s5 + $0xc] sm:$0xf]
  %v1694 = vld [vmem:[%s5 + $0x10] sm:$0xf]
  %v1695 = vld [vmem:[%s5 + $0x14] sm:$0xf]
  %v1696 = vld [vmem:[%s5 + $0x18] sm:$0xf]
  %v1697 = vld [vmem:[%s5 + $0x1c] sm:$0xf]
  %v1698 = vld [vmem:[%s5 + $0x20] sm:$0xf]
  %v1699 = vld [vmem:[%s5 + $0x24] sm:$0xf]
  %v1700 = vld [vmem:[%s5 + $0x28] sm:$0xf]
  %v1701 = vld [vmem:[%s5 + $0x2c] sm:$0xf]
  %v1702 = vld [vmem:[%s5 + $0x30] sm:$0xf]
  %v1703 = vld [vmem:[%s5 + $0x34] sm:$0xf]
  %v1704 = vld [vmem:[%s5 + $0x38] sm:$0xf]
  %v1705 = vld [vmem:[%s5 + $0x3c] sm:$0xf]
  %v1706 = vld [vmem:[%s6] sm:$0x1]
  %v1708 = vperm.slane %v1706, 0
  %v1726 = vunpack.c.l.b16 %v1690
  %v1727 = vunpack.c.l.b16 %v1691
  %v1728 = vunpack.c.l.b16 %v1692
  %v1729 = vunpack.c.l.b16 %v1693
  %v1730 = vunpack.c.l.b16 %v1694
  %v1731 = vunpack.c.l.b16 %v1695
  %v1732 = vunpack.c.l.b16 %v1696
  %v1733 = vunpack.c.l.b16 %v1697
  %v1734 = vunpack.c.l.b16 %v1698
  %v1735 = vunpack.c.l.b16 %v1699
  %v1736 = vunpack.c.l.b16 %v1700
  %v1737 = vunpack.c.l.b16 %v1701
  %v1738 = vunpack.c.l.b16 %v1702
  %v1739 = vunpack.c.l.b16 %v1703
  %v1740 = vunpack.c.l.b16 %v1704
  %v1741 = vunpack.c.l.b16 %v1705
  %v1742 = vpack.c.b16 %v1727, %v1726
  %v1743 = vpack.c.b16 %v1729, %v1728
  %v1744 = vpack.c.b16 %v1731, %v1730
  %v1745 = vpack.c.b16 %v1733, %v1732
  %v1746 = vpack.c.b16 %v1735, %v1734
  %v1747 = vpack.c.b16 %v1737, %v1736
  %v1748 = vpack.c.b16 %v1739, %v1738
  %v1749 = vpack.c.b16 %v1741, %v1740
  %1758 = vmatpush.bf16.msra.mxu0 %v1749
  %1759 = vmatpush.bf16.msra.mxu0 %v1748
  %1760 = vmatpush.bf16.msra.mxu0 %v1747
  %1761 = vmatpush.bf16.msra.mxu0 %v1746
  %1762 = vmatpush.bf16.msra.mxu0 %v1745
  %1763 = vmatpush.bf16.msra.mxu0 %v1744
  %1764 = vmatpush.bf16.msra.mxu0 %v1743
  %1765 = vmatpush.bf16.msra.mxu0 %v1742
  %1766 = vmatmul.bf16.gmra.mxu0 %v1674
  %v1767 = vpop.f32.mrf.mxu0
  %v1768 = vadd.f32 %v1708, %v1767
  %v1769 = vpop.f32.mrf.mxu0
  %v1770 = vadd.f32 %v1708, %v1769
  %1771 = vmatmul.bf16.gmra.mxu0 %v1675
  %v1772 = vpop.f32.mrf.mxu0
  %v1773 = vadd.f32 %v1708, %v1772
  %v1774 = vpop.f32.mrf.mxu0
  %v1775 = vadd.f32 %v1708, %v1774
  %1776 = vmatmul.bf16.gmra.mxu0 %v1676
  %v1777 = vpop.f32.mrf.mxu0
  %v1778 = vadd.f32 %v1708, %v1777
  %v1779 = vpop.f32.mrf.mxu0
  %v1780 = vadd.f32 %v1708, %v1779
  %1781 = vmatmul.bf16.gmra.mxu0 %v1677
  %v1782 = vpop.f32.mrf.mxu0
  %v1783 = vadd.f32 %v1708, %v1782
  %v1784 = vpop.f32.mrf.mxu0
  %v1785 = vadd.f32 %v1708, %v1784
  %1786 = vmatmul.bf16.gmra.mxu0 %v1678
  %v1787 = vpop.f32.mrf.mxu0
  %v1788 = vadd.f32 %v1708, %v1787
  %v1789 = vpop.f32.mrf.mxu0
  %v1790 = vadd.f32 %v1708, %v1789
  %1791 = vmatmul.bf16.gmra.mxu0 %v1679
  %v1792 = vpop.f32.mrf.mxu0
  %v1793 = vadd.f32 %v1708, %v1792
  %v1794 = vpop.f32.mrf.mxu0
  %v1795 = vadd.f32 %v1708, %v1794
  %1796 = vmatmul.bf16.gmra.mxu0 %v1680
  %v1797 = vpop.f32.mrf.mxu0
  %v1798 = vadd.f32 %v1708, %v1797
  %v1799 = vpop.f32.mrf.mxu0
  %v1800 = vadd.f32 %v1708, %v1799
  %1801 = vmatmul.bf16.gmra.mxu0 %v1681
  %v1802 = vpop.f32.mrf.mxu0
  %v1803 = vadd.f32 %v1708, %v1802
  %v1804 = vpop.f32.mrf.mxu0
  %v1805 = vadd.f32 %v1708, %v1804
  %1806 = vmatmul.bf16.gmra.mxu0 %v1682
  %v1807 = vpop.f32.mrf.mxu0
  %v1808 = vadd.f32 %v1708, %v1807
  %v1809 = vpop.f32.mrf.mxu0
  %v1810 = vadd.f32 %v1708, %v1809
  %1811 = vmatmul.bf16.gmra.mxu0 %v1683
  %v1812 = vpop.f32.mrf.mxu0
  %v1813 = vadd.f32 %v1708, %v1812
  %v1814 = vpop.f32.mrf.mxu0
  %v1815 = vadd.f32 %v1708, %v1814
  %1816 = vmatmul.bf16.gmra.mxu0 %v1684
  %v1817 = vpop.f32.mrf.mxu0
  %v1818 = vadd.f32 %v1708, %v1817
  %v1819 = vpop.f32.mrf.mxu0
  %v1820 = vadd.f32 %v1708, %v1819
  %1821 = vmatmul.bf16.gmra.mxu0 %v1685
  %v1822 = vpop.f32.mrf.mxu0
  %v1823 = vadd.f32 %v1708, %v1822
  %v1824 = vpop.f32.mrf.mxu0
  %v1825 = vadd.f32 %v1708, %v1824
  %1826 = vmatmul.bf16.gmra.mxu0 %v1686
  %v1827 = vpop.f32.mrf.mxu0
  %v1828 = vadd.f32 %v1708, %v1827
  %v1829 = vpop.f32.mrf.mxu0
  %v1830 = vadd.f32 %v1708, %v1829
  %1831 = vmatmul.bf16.gmra.mxu0 %v1687
  %v1832 = vpop.f32.mrf.mxu0
  %v1833 = vadd.f32 %v1708, %v1832
  %v1834 = vpop.f32.mrf.mxu0
  %v1835 = vadd.f32 %v1708, %v1834
  %1836 = vmatmul.bf16.gmra.mxu0 %v1688
  %v1837 = vpop.f32.mrf.mxu0
  %v1838 = vadd.f32 %v1708, %v1837
  %v1839 = vpop.f32.mrf.mxu0
  %v1840 = vadd.f32 %v1708, %v1839
  %1841 = vmatmul.bf16.gmra.mxu0 %v1689
  %v1842 = vpop.f32.mrf.mxu0
  %v1843 = vadd.f32 %v1708, %v1842
  %v1844 = vpop.f32.mrf.mxu0
  %v1845 = vadd.f32 %v1708, %v1844
  %1846 = vdwg.mxu0
  %v1847 = vmax.f32 %v1768, 0.0
  %v1848 = vmax.f32 %v1770, 0.0
  %v1849 = vmax.f32 %v1773, 0.0
  %v1850 = vmax.f32 %v1775, 0.0
  %v1851 = vmax.f32 %v1778, 0.0
  %v1852 = vmax.f32 %v1780, 0.0
  %v1853 = vmax.f32 %v1783, 0.0
  %v1854 = vmax.f32 %v1785, 0.0
  %v1855 = vmax.f32 %v1788, 0.0
  %v1856 = vmax.f32 %v1790, 0.0
  %v1857 = vmax.f32 %v1793, 0.0
  %v1858 = vmax.f32 %v1795, 0.0
  %v1859 = vmax.f32 %v1798, 0.0
  %v1860 = vmax.f32 %v1800, 0.0
  %v1861 = vmax.f32 %v1803, 0.0
  %v1862 = vmax.f32 %v1805, 0.0
  %v1863 = vmax.f32 %v1808, 0.0
  %v1864 = vmax.f32 %v1810, 0.0
  %v1865 = vmax.f32 %v1813, 0.0
  %v1866 = vmax.f32 %v1815, 0.0
  %v1867 = vmax.f32 %v1818, 0.0
  %v1868 = vmax.f32 %v1820, 0.0
  %v1869 = vmax.f32 %v1823, 0.0
  %v1870 = vmax.f32 %v1825, 0.0
  %v1871 = vmax.f32 %v1828, 0.0
  %v1872 = vmax.f32 %v1830, 0.0
  %v1873 = vmax.f32 %v1833, 0.0
  %v1874 = vmax.f32 %v1835, 0.0
  %v1875 = vmax.f32 %v1838, 0.0
  %v1876 = vmax.f32 %v1840, 0.0
  %v1877 = vmax.f32 %v1843, 0.0
  %v1878 = vmax.f32 %v1845, 0.0
  %v1879 = vpack.c.bf16 %v1848, %v1847
  %v1880 = vpack.c.bf16 %v1850, %v1849
  %v1881 = vpack.c.bf16 %v1852, %v1851
  %v1882 = vpack.c.bf16 %v1854, %v1853
  %v1883 = vpack.c.bf16 %v1856, %v1855
  %v1884 = vpack.c.bf16 %v1858, %v1857
  %v1885 = vpack.c.bf16 %v1860, %v1859
  %v1886 = vpack.c.bf16 %v1862, %v1861
  %v1887 = vpack.c.bf16 %v1864, %v1863
  %v1888 = vpack.c.bf16 %v1866, %v1865
  %v1889 = vpack.c.bf16 %v1868, %v1867
  %v1890 = vpack.c.bf16 %v1870, %v1869
  %v1891 = vpack.c.bf16 %v1872, %v1871
  %v1892 = vpack.c.bf16 %v1874, %v1873
  %v1893 = vpack.c.bf16 %v1876, %v1875
  %v1894 = vpack.c.bf16 %v1878, %v1877
  %v1895 = vld [vmem:[%s7] sm:$0xf]
  %v1896 = vld [vmem:[%s7 + $0x4] sm:$0xf]
  %v1897 = vld [vmem:[%s7 + $0x8] sm:$0xf]
  %v1898 = vld [vmem:[%s7 + $0xc] sm:$0xf]
  %v1899 = vld [vmem:[%s7 + $0x10] sm:$0xf]
  %v1900 = vld [vmem:[%s7 + $0x14] sm:$0xf]
  %v1901 = vld [vmem:[%s7 + $0x18] sm:$0xf]
  %v1902 = vld [vmem:[%s7 + $0x1c] sm:$0xf]
  %v1903 = vld [vmem:[%s7 + $0x20] sm:$0xf]
  %v1904 = vld [vmem:[%s7 + $0x24] sm:$0xf]
  %v1905 = vld [vmem:[%s7 + $0x28] sm:$0xf]
  %v1906 = vld [vmem:[%s7 + $0x2c] sm:$0xf]
  %v1907 = vld [vmem:[%s7 + $0x30] sm:$0xf]
  %v1908 = vld [vmem:[%s7 + $0x34] sm:$0xf]
  %v1909 = vld [vmem:[%s7 + $0x38] sm:$0xf]
  %v1910 = vld [vmem:[%s7 + $0x3c] sm:$0xf]
  %v1911 = vld [vmem:[%s8] sm:$0x1]
  %v1913 = vperm.slane %v1911, 0
  %v1931 = vunpack.c.l.b16 %v1895
  %v1932 = vunpack.c.l.b16 %v1896
  %v1933 = vunpack.c.l.b16 %v1897
  %v1934 = vunpack.c.l.b16 %v1898
  %v1935 = vunpack.c.l.b16 %v1899
  %v1936 = vunpack.c.l.b16 %v1900
  %v1937 = vunpack.c.l.b16 %v1901
  %v1938 = vunpack.c.l.b16 %v1902
  %v1939 = vunpack.c.l.b16 %v1903
  %v1940 = vunpack.c.l.b16 %v1904
  %v1941 = vunpack.c.l.b16 %v1905
  %v1942 = vunpack.c.l.b16 %v1906
  %v1943 = vunpack.c.l.b16 %v1907
  %v1944 = vunpack.c.l.b16 %v1908
  %v1945 = vunpack.c.l.b16 %v1909
  %v1946 = vunpack.c.l.b16 %v1910
  %v1947 = vpack.c.b16 %v1932, %v1931
  %v1948 = vpack.c.b16 %v1934, %v1933
  %v1949 = vpack.c.b16 %v1936, %v1935
  %v1950 = vpack.c.b16 %v1938, %v1937
  %v1951 = vpack.c.b16 %v1940, %v1939
  %v1952 = vpack.c.b16 %v1942, %v1941
  %v1953 = vpack.c.b16 %v1944, %v1943
  %v1954 = vpack.c.b16 %v1946, %v1945
  %1963 = vmatpush.bf16.msra.mxu0 %v1954
  %1964 = vmatpush.bf16.msra.mxu0 %v1953
  %1965 = vmatpush.bf16.msra.mxu0 %v1952
  %1966 = vmatpush.bf16.msra.mxu0 %v1951
  %1967 = vmatpush.bf16.msra.mxu0 %v1950
  %1968 = vmatpush.bf16.msra.mxu0 %v1949
  %1969 = vmatpush.bf16.msra.mxu0 %v1948
  %1970 = vmatpush.bf16.msra.mxu0 %v1947
  %1971 = vmatmul.bf16.gmra.mxu0 %v1879
  %v1972 = vpop.f32.mrf.mxu0
  %v1973 = vadd.f32 %v1913, %v1972
  %v1974 = vpop.f32.mrf.mxu0
  %v1975 = vadd.f32 %v1913, %v1974
  %1976 = vmatmul.bf16.gmra.mxu0 %v1880
  %v1977 = vpop.f32.mrf.mxu0
  %v1978 = vadd.f32 %v1913, %v1977
  %v1979 = vpop.f32.mrf.mxu0
  %v1980 = vadd.f32 %v1913, %v1979
  %1981 = vmatmul.bf16.gmra.mxu0 %v1881
  %v1982 = vpop.f32.mrf.mxu0
  %v1983 = vadd.f32 %v1913, %v1982
  %v1984 = vpop.f32.mrf.mxu0
  %v1985 = vadd.f32 %v1913, %v1984
  %1986 = vmatmul.bf16.gmra.mxu0 %v1882
  %v1987 = vpop.f32.mrf.mxu0
  %v1988 = vadd.f32 %v1913, %v1987
  %v1989 = vpop.f32.mrf.mxu0
  %v1990 = vadd.f32 %v1913, %v1989
  %1991 = vmatmul.bf16.gmra.mxu0 %v1883
  %v1992 = vpop.f32.mrf.mxu0
  %v1993 = vadd.f32 %v1913, %v1992
  %v1994 = vpop.f32.mrf.mxu0
  %v1995 = vadd.f32 %v1913, %v1994
  %1996 = vmatmul.bf16.gmra.mxu0 %v1884
  %v1997 = vpop.f32.mrf.mxu0
  %v1998 = vadd.f32 %v1913, %v1997
  %v1999 = vpop.f32.mrf.mxu0
  %v2000 = vadd.f32 %v1913, %v1999
  %2001 = vmatmul.bf16.gmra.mxu0 %v1885
  %v2002 = vpop.f32.mrf.mxu0
  %v2003 = vadd.f32 %v1913, %v2002
  %v2004 = vpop.f32.mrf.mxu0
  %v2005 = vadd.f32 %v1913, %v2004
  %2006 = vmatmul.bf16.gmra.mxu0 %v1886
  %v2007 = vpop.f32.mrf.mxu0
  %v2008 = vadd.f32 %v1913, %v2007
  %v2009 = vpop.f32.mrf.mxu0
  %v2010 = vadd.f32 %v1913, %v2009
  %2011 = vmatmul.bf16.gmra.mxu0 %v1887
  %v2012 = vpop.f32.mrf.mxu0
  %v2013 = vadd.f32 %v1913, %v2012
  %v2014 = vpop.f32.mrf.mxu0
  %v2015 = vadd.f32 %v1913, %v2014
  %2016 = vmatmul.bf16.gmra.mxu0 %v1888
  %v2017 = vpop.f32.mrf.mxu0
  %v2018 = vadd.f32 %v1913, %v2017
  %v2019 = vpop.f32.mrf.mxu0
  %v2020 = vadd.f32 %v1913, %v2019
  %2021 = vmatmul.bf16.gmra.mxu0 %v1889
  %v2022 = vpop.f32.mrf.mxu0
  %v2023 = vadd.f32 %v1913, %v2022
  %v2024 = vpop.f32.mrf.mxu0
  %v2025 = vadd.f32 %v1913, %v2024
  %2026 = vmatmul.bf16.gmra.mxu0 %v1890
  %v2027 = vpop.f32.mrf.mxu0
  %v2028 = vadd.f32 %v1913, %v2027
  %v2029 = vpop.f32.mrf.mxu0
  %v2030 = vadd.f32 %v1913, %v2029
  %2031 = vmatmul.bf16.gmra.mxu0 %v1891
  %v2032 = vpop.f32.mrf.mxu0
  %v2033 = vadd.f32 %v1913, %v2032
  %v2034 = vpop.f32.mrf.mxu0
  %v2035 = vadd.f32 %v1913, %v2034
  %2036 = vmatmul.bf16.gmra.mxu0 %v1892
  %v2037 = vpop.f32.mrf.mxu0
  %v2038 = vadd.f32 %v1913, %v2037
  %v2039 = vpop.f32.mrf.mxu0
  %v2040 = vadd.f32 %v1913, %v2039
  %2041 = vmatmul.bf16.gmra.mxu0 %v1893
  %v2042 = vpop.f32.mrf.mxu0
  %v2043 = vadd.f32 %v1913, %v2042
  %v2044 = vpop.f32.mrf.mxu0
  %v2045 = vadd.f32 %v1913, %v2044
  %2046 = vmatmul.bf16.gmra.mxu0 %v1894
  %v2047 = vpop.f32.mrf.mxu0
  %v2048 = vadd.f32 %v1913, %v2047
  %v2049 = vpop.f32.mrf.mxu0
  %v2050 = vadd.f32 %v1913, %v2049
  %2051 = vdwg.mxu0
  %2052 = vst [vmem:[%s9] sm:$0xff] %v1973
  %2053 = vst [vmem:[%s9 + $0x8] sm:$0xff] %v1975
  %2054 = vst [vmem:[%s9 + $0x10] sm:$0xff] %v1978
  %2055 = vst [vmem:[%s9 + $0x18] sm:$0xff] %v1980
  %2056 = vst [vmem:[%s9 + $0x20] sm:$0xff] %v1983
  %2057 = vst [vmem:[%s9 + $0x28] sm:$0xff] %v1985
  %2058 = vst [vmem:[%s9 + $0x30] sm:$0xff] %v1988
  %2059 = vst [vmem:[%s9 + $0x38] sm:$0xff] %v1990
  %2060 = vst [vmem:[%s9 + $0x40] sm:$0xff] %v1993
  %2061 = vst [vmem:[%s9 + $0x48] sm:$0xff] %v1995
  %2062 = vst [vmem:[%s9 + $0x50] sm:$0xff] %v1998
  %2063 = vst [vmem:[%s9 + $0x58] sm:$0xff] %v2000
  %2064 = vst [vmem:[%s9 + $0x60] sm:$0xff] %v2003
  %2065 = vst [vmem:[%s9 + $0x68] sm:$0xff] %v2005
  %2066 = vst [vmem:[%s9 + $0x70] sm:$0xff] %v2008
  %2067 = vst [vmem:[%s9 + $0x78] sm:$0xff] %v2010
  %2068 = vst [vmem:[%s9 + $0x80] sm:$0xff] %v2013
  %2069 = vst [vmem:[%s9 + $0x88] sm:$0xff] %v2015
  %2070 = vst [vmem:[%s9 + $0x90] sm:$0xff] %v2018
  %2071 = vst [vmem:[%s9 + $0x98] sm:$0xff] %v2020
  %2072 = vst [vmem:[%s9 + $0xa0] sm:$0xff] %v2023
  %2073 = vst [vmem:[%s9 + $0xa8] sm:$0xff] %v2025
  %2074 = vst [vmem:[%s9 + $0xb0] sm:$0xff] %v2028
  %2075 = vst [vmem:[%s9 + $0xb8] sm:$0xff] %v2030
  %2076 = vst [vmem:[%s9 + $0xc0] sm:$0xff] %v2033
  %2077 = vst [vmem:[%s9 + $0xc8] sm:$0xff] %v2035
  %2078 = vst [vmem:[%s9 + $0xd0] sm:$0xff] %v2038
  %2079 = vst [vmem:[%s9 + $0xd8] sm:$0xff] %v2040
  %2080 = vst [vmem:[%s9 + $0xe0] sm:$0xff] %v2043
  %2081 = vst [vmem:[%s9 + $0xe8] sm:$0xff] %v2045
  %2082 = vst [vmem:[%s9 + $0xf0] sm:$0xff] %v2048
  %2083 = vst [vmem:[%s9 + $0xf8] sm:$0xff] %v2050
  // Predicated region
  $region38: #{_forward_impl.1} parent=0 // pred_check
    _
  $region39: #{_forward_impl.1} parent=0 // pred_check_branch
    %2085 = sbr.rel (0) target = $region41
  $region40: #{_forward_impl.1} parent=0 // pred_region
    _
  $region41: #{_forward_impl.1} parent=0 // pred_fallthru
    _
  // Predicated region
  $region42: #{_forward_impl.1} parent=0 // pred_check
    _
  $region43: #{_forward_impl.1} parent=0 // pred_check_branch
    %2087 = sbr.rel (0) target = $region45
  $region44: #{_forward_impl.1} parent=0 // pred_region
    _
  $region45: #{_forward_impl.1} parent=0 // pred_fallthru
    _

</llo_original>
